<compile_context>
chip_gen: v5e
topology: v5e:2x2
jax: 0.10.0
libtpu: 0.0.40
codegen_flags: <defaults>
</compile_context>

<pallas_src>
import functools

import jax
import jax.numpy as jnp
from jax.experimental import pallas as pl
from jax.experimental.pallas import tpu as pltpu


# ----------------------------- config ---------------------------------------
D_VOCAB = 98
D_MODEL = 128
N_CTX = 3
D_MLP = 4 * 128           # 512
P = 97                    # number of output classes
P_PAD = 128               # pad last dim to a lane-dense multiple of 128
IN_DIM = N_CTX * D_MODEL  # 384
TB_MAX = 512              # batch tile: multiple of 256 for v6e/v7x MXU rows


# ----------------------------- kernel ---------------------------------------
def mlp_kernel(x_ref, w1_ref, b1_ref, w2_ref, b2_ref, w3_ref, b3_ref, o_ref):
    # hidden1 + ReLU
    h = jnp.dot(x_ref[...], w1_ref[...], preferred_element_type=jnp.float32)
    h = jnp.maximum(h + b1_ref[...], 0.0)
    # hidden2 + ReLU
    h = jnp.dot(h, w2_ref[...], preferred_element_type=jnp.float32)
    h = jnp.maximum(h + b2_ref[...], 0.0)
    # output projection (padded to P_PAD lanes)
    o = jnp.dot(h, w3_ref[...], preferred_element_type=jnp.float32)
    o_ref[...] = o + b3_ref[...]


# ----------------------------- wrapper ---------------------------------------
def prepare_params(params):
    """One-time prep (hoisted out of the per-call path): transpose the
    embedding table and zero-pad the output projection to 128 lanes."""
    W_E, W1, b1, W2, b2, W3, b3 = params
    W_E_T = jnp.asarray(W_E.T, jnp.float32)                          # (d_vocab, d_model)
    W3p = jnp.zeros((D_MLP, P_PAD), jnp.float32).at[:, :P].set(W3)
    b3p = jnp.zeros((1, P_PAD), jnp.float32).at[:, :P].set(b3)
    return (W_E_T,
            jnp.asarray(W1, jnp.float32),
            jnp.asarray(b1, jnp.float32).reshape(1, -1),
            jnp.asarray(W2, jnp.float32),
            jnp.asarray(b2, jnp.float32).reshape(1, -1),
            W3p, b3p)


def _batch_tiling(B):
    """Pick a batch tile TB (multiple of 8; up to TB_MAX) and padded batch."""
    b8 = ((B + 7) // 8) * 8                  # f32 sublane alignment
    tb = TB_MAX if b8 >= TB_MAX else b8
    b_pad = ((b8 + tb - 1) // tb) * tb
    return tb, b_pad


@jax.jit
def two_layer_mlp_forward(x_tokens, prepared):
    """x_tokens: (B, N_CTX) int32 token ids. Returns (B, P) float32 logits."""
    W_E_T, W1, b1, W2, b2, W3p, b3p = prepared
    B = x_tokens.shape[0]
    TB, B_pad = _batch_tiling(B)
    n_tiles = B_pad // TB

    # --- embedding gather + flatten (glue, plain JAX)
    # TODO(synk): fuse this gather into the kernel via scalar-prefetched token
    # ids to avoid the extra HBM round-trip of x_flat at very large B.
    x_flat = W_E_T[x_tokens].reshape(B, IN_DIM).astype(jnp.float32)
    if B_pad != B:
        x_flat = jnp.pad(x_flat, ((0, B_pad - B), (0, 0)))

    flops = 2 * B_pad * (IN_DIM * D_MLP + D_MLP * D_MLP + D_MLP * P_PAD)
    bytes_accessed = 4 * (B_pad * IN_DIM + B_pad * P_PAD
                          + IN_DIM * D_MLP + D_MLP * D_MLP + D_MLP * P_PAD
                          + 2 * D_MLP + P_PAD)

    out_padded = pl.pallas_call(
        mlp_kernel,
        out_shape=jax.ShapeDtypeStruct((B_pad, P_PAD), jnp.float32),
        grid_spec=pltpu.PrefetchScalarGridSpec(
            num_scalar_prefetch=0,
            grid=(n_tiles,),
            in_specs=[
                # batch-tiled activations
                pl.BlockSpec((TB, IN_DIM), lambda i: (i, 0)),
                # weights / biases: same block every iteration -> VMEM-resident
                pl.BlockSpec((IN_DIM, D_MLP), lambda i: (0, 0)),
                pl.BlockSpec((1, D_MLP), lambda i: (0, 0)),
                pl.BlockSpec((D_MLP, D_MLP), lambda i: (0, 0)),
                pl.BlockSpec((1, D_MLP), lambda i: (0, 0)),
                pl.BlockSpec((D_MLP, P_PAD), lambda i: (0, 0)),
                pl.BlockSpec((1, P_PAD), lambda i: (0, 0)),
            ],
            out_specs=pl.BlockSpec((TB, P_PAD), lambda i: (i, 0)),
        ),
        compiler_params=pltpu.CompilerParams(
            dimension_semantics=("parallel",),          # megacore on v7x
            vmem_limit_bytes=48 * 1024 * 1024,
        ),
        cost_estimate=pl.CostEstimate(
            flops=flops, transcendentals=0, bytes_accessed=bytes_accessed),
    )(x_flat, W1, b1, W2, b2, W3p, b3p)

    return out_padded[:B, :P]


# ----------------------------- param init -----------------------------------
def init_params(key):
    k_e, k1, kb1, k2, kb2, k3, kb3 = jax.random.split(key, 7)
    W_E = jax.random.normal(k_e, (D_MODEL, D_VOCAB), jnp.float32) / jnp.sqrt(D_MODEL)
    # nn.Linear weights are (out, in); store transposed (in, out) for the kernel.
    W1 = jax.random.normal(k1, (IN_DIM, D_MLP), jnp.float32) * 0.02
    b1 = jax.random.normal(kb1, (D_MLP,), jnp.float32) * 0.02
    W2 = jax.random.normal(k2, (D_MLP, D_MLP), jnp.float32) * 0.02
    b2 = jax.random.normal(kb2, (D_MLP,), jnp.float32) * 0.02
    W3 = jax.random.normal(k3, (D_MLP, P), jnp.float32) * 0.02
    b3 = jax.random.normal(kb3, (P,), jnp.float32) * 0.02
    return (W_E, W1, b1, W2, b2, W3, b3)


def reference_forward(x_tokens, params):
    W_E, W1, b1, W2, b2, W3, b3 = params
    B = x_tokens.shape[0]
    x = W_E.T[x_tokens].reshape(B, IN_DIM)
    h = jnp.maximum(x @ W1 + b1, 0.0)
    h = jnp.maximum(h @ W2 + b2, 0.0)
    return h @ W3 + b3


# ----------------------------- main ------------------------------------------
if __name__ == "__main__":
    key = jax.random.PRNGKey(0)
    kp, kx1, kx2 = jax.random.split(key, 3)
    params = init_params(kp)
    prepared = prepare_params(params)

    # Small batch (single tile, no padding beyond sublane alignment).
    B = 8
    x_small = jax.random.randint(kx1, (B, N_CTX), 0, D_VOCAB, dtype=jnp.int32)
    out = jax.block_until_ready(two_layer_mlp_forward(x_small, prepared))
    ref = reference_forward(x_small, params)
    assert out.shape == (B, P)
    assert jnp.allclose(out, ref, atol=1e-4, rtol=1e-4), "mismatch vs JAX reference (B=8)"

    # Larger batch: exercises multi-tile grid + zero-padded tail rows.
    B2 = 600
    x_big = jax.random.randint(kx2, (B2, N_CTX), 0, D_VOCAB, dtype=jnp.int32)
    out2 = jax.block_until_ready(two_layer_mlp_forward(x_big, prepared))
    ref2 = reference_forward(x_big, params)
    assert out2.shape == (B2, P)
    assert jnp.allclose(out2, ref2, atol=1e-4, rtol=1e-4), "mismatch vs JAX reference (B=600)"

    print("KERNEL_OK")
</pallas_src>

<mosaic_0001>
module attributes {stable_mosaic.version = 11 : i64} {
  func.func @mlp_kernel(%arg0: i32, %arg1: memref<8x384xf32, #tpu.memory_space<vmem>>, %arg2: memref<384x512xf32, #tpu.memory_space<vmem>>, %arg3: memref<1x512xf32, #tpu.memory_space<vmem>>, %arg4: memref<512x512xf32, #tpu.memory_space<vmem>>, %arg5: memref<1x512xf32, #tpu.memory_space<vmem>>, %arg6: memref<512x128xf32, #tpu.memory_space<vmem>>, %arg7: memref<1x128xf32, #tpu.memory_space<vmem>>, %arg8: memref<8x128xf32, #tpu.memory_space<vmem>>) attributes {dimension_semantics = [#tpu.dimension_semantics<parallel>], iteration_bounds = array<i64: 1>, scalar_prefetch = 0 : i64, scratch_operands = 0 : i64, tpu.core_type = #tpu.core_type<tc>, window_params = [{transform_indices = @transform_0, window_bounds = array<i64: 8, 384>}, {pipeline_mode = #tpu.pipeline_mode<synchronous>, transform_indices = @transform_1, window_bounds = array<i64: 384, 512>}, {pipeline_mode = #tpu.pipeline_mode<synchronous>, transform_indices = @transform_2, window_bounds = array<i64: 1, 512>}, {pipeline_mode = #tpu.pipeline_mode<synchronous>, transform_indices = @transform_3, window_bounds = array<i64: 512, 512>}, {pipeline_mode = #tpu.pipeline_mode<synchronous>, transform_indices = @transform_4, window_bounds = array<i64: 1, 512>}, {pipeline_mode = #tpu.pipeline_mode<synchronous>, transform_indices = @transform_5, window_bounds = array<i64: 512, 128>}, {pipeline_mode = #tpu.pipeline_mode<synchronous>, transform_indices = @transform_6, window_bounds = array<i64: 1, 128>}, {transform_indices = @transform_7, window_bounds = array<i64: 8, 128>}]} {
    %c0 = arith.constant 0 : index
    %c0_0 = arith.constant 0 : index
    %0 = vector.load %arg1[%c0, %c0_0] : memref<8x384xf32, #tpu.memory_space<vmem>>, vector<8x384xf32>
    %c0_1 = arith.constant 0 : index
    %c0_2 = arith.constant 0 : index
    %1 = vector.load %arg2[%c0_1, %c0_2] : memref<384x512xf32, #tpu.memory_space<vmem>>, vector<384x512xf32>
    %cst = arith.constant dense<0.000000e+00> : vector<8x512xf32>
    %2 = tpu.matmul %0, %1, %cst {dimension_numbers = #tpu.dot_dimension_numbers<[1], [0], [0], [1], [0, 0, 1, 1], [], []>} : vector<8x384xf32>, vector<384x512xf32>, vector<8x512xf32> -> vector<8x512xf32>
    %c0_3 = arith.constant 0 : index
    %c0_4 = arith.constant 0 : index
    %3 = vector.load %arg3[%c0_3, %c0_4] : memref<1x512xf32, #tpu.memory_space<vmem>>, vector<1x512xf32>
    %4 = vector.broadcast %3 : vector<1x512xf32> to vector<8x512xf32>
    %5 = arith.addf %2, %4 : vector<8x512xf32>
    %cst_5 = arith.constant 0.000000e+00 : f32
    %6 = vector.broadcast %cst_5 : f32 to vector<8x512xf32>
    %7 = arith.maximumf %5, %6 : vector<8x512xf32>
    %c0_6 = arith.constant 0 : index
    %c0_7 = arith.constant 0 : index
    %8 = vector.load %arg4[%c0_6, %c0_7] : memref<512x512xf32, #tpu.memory_space<vmem>>, vector<512x512xf32>
    %cst_8 = arith.constant dense<0.000000e+00> : vector<8x512xf32>
    %9 = tpu.matmul %7, %8, %cst_8 {dimension_numbers = #tpu.dot_dimension_numbers<[1], [0], [0], [1], [0, 0, 1, 1], [], []>} : vector<8x512xf32>, vector<512x512xf32>, vector<8x512xf32> -> vector<8x512xf32>
    %c0_9 = arith.constant 0 : index
    %c0_10 = arith.constant 0 : index
    %10 = vector.load %arg5[%c0_9, %c0_10] : memref<1x512xf32, #tpu.memory_space<vmem>>, vector<1x512xf32>
    %11 = vector.broadcast %10 : vector<1x512xf32> to vector<8x512xf32>
    %12 = arith.addf %9, %11 : vector<8x512xf32>
    %cst_11 = arith.constant 0.000000e+00 : f32
    %13 = vector.broadcast %cst_11 : f32 to vector<8x512xf32>
    %14 = arith.maximumf %12, %13 : vector<8x512xf32>
    %c0_12 = arith.constant 0 : index
    %c0_13 = arith.constant 0 : index
    %15 = vector.load %arg6[%c0_12, %c0_13] : memref<512x128xf32, #tpu.memory_space<vmem>>, vector<512x128xf32>
    %cst_14 = arith.constant dense<0.000000e+00> : vector<8x128xf32>
    %16 = tpu.matmul %14, %15, %cst_14 {dimension_numbers = #tpu.dot_dimension_numbers<[1], [0], [0], [1], [0, 0, 1, 1], [], []>} : vector<8x512xf32>, vector<512x128xf32>, vector<8x128xf32> -> vector<8x128xf32>
    %c0_15 = arith.constant 0 : index
    %c0_16 = arith.constant 0 : index
    %17 = vector.load %arg7[%c0_15, %c0_16] : memref<1x128xf32, #tpu.memory_space<vmem>>, vector<1x128xf32>
    %18 = vector.broadcast %17 : vector<1x128xf32> to vector<8x128xf32>
    %19 = arith.addf %16, %18 : vector<8x128xf32>
    %c0_17 = arith.constant 0 : index
    %c0_18 = arith.constant 0 : index
    %20 = vector.load %arg8[%c0_17, %c0_18] : memref<8x128xf32, #tpu.memory_space<vmem>>, vector<8x128xf32>
    tpu.vector_store %arg8[%c0_17, %c0_18], %19 {strides = array<i32>} : memref<8x128xf32, #tpu.memory_space<vmem>>, vector<8x128xf32>,
    return
  }
  func.func @transform_0(%arg0: i32) -> (i32, i32) {
    %c0_i32 = arith.constant 0 : i32
    %c0_i32_0 = arith.constant 0 : i32
    return %arg0, %c0_i32 : i32, i32
  }
  func.func @transform_1(%arg0: i32) -> (i32, i32) {
    %c0_i32 = arith.constant 0 : i32
    %c0_i32_0 = arith.constant 0 : i32
    %c0_i32_1 = arith.constant 0 : i32
    return %c0_i32, %c0_i32_0 : i32, i32
  }
  func.func @transform_2(%arg0: i32) -> (i32, i32) {
    %c0_i32 = arith.constant 0 : i32
    %c0_i32_0 = arith.constant 0 : i32
    %c0_i32_1 = arith.constant 0 : i32
    return %c0_i32, %c0_i32_0 : i32, i32
  }
  func.func @transform_3(%arg0: i32) -> (i32, i32) {
    %c0_i32 = arith.constant 0 : i32
    %c0_i32_0 = arith.constant 0 : i32
    %c0_i32_1 = arith.constant 0 : i32
    return %c0_i32, %c0_i32_0 : i32, i32
  }
  func.func @transform_4(%arg0: i32) -> (i32, i32) {
    %c0_i32 = arith.constant 0 : i32
    %c0_i32_0 = arith.constant 0 : i32
    %c0_i32_1 = arith.constant 0 : i32
    return %c0_i32, %c0_i32_0 : i32, i32
  }
  func.func @transform_5(%arg0: i32) -> (i32, i32) {
    %c0_i32 = arith.constant 0 : i32
    %c0_i32_0 = arith.constant 0 : i32
    %c0_i32_1 = arith.constant 0 : i32
    return %c0_i32, %c0_i32_0 : i32, i32
  }
  func.func @transform_6(%arg0: i32) -> (i32, i32) {
    %c0_i32 = arith.constant 0 : i32
    %c0_i32_0 = arith.constant 0 : i32
    %c0_i32_1 = arith.constant 0 : i32
    return %c0_i32, %c0_i32_0 : i32, i32
  }
  func.func @transform_7(%arg0: i32) -> (i32, i32) {
    %c0_i32 = arith.constant 0 : i32
    %c0_i32_0 = arith.constant 0 : i32
    return %arg0, %c0_i32 : i32, i32
  }
}

</mosaic_0001>

<llo_original>
// kernel: two_layer_mlp_forward.1
$region0: #{two_layer_mlp_forward.1}
  #allocation0 [shape = 'u32[]', space=smem, size = 0x4, offset = 0x4, fixed_abs, tag = 'smem constant byte address 0x4 - core index']
  #allocation1 [shape = 'u32[72,128]{1,0:T(1,128)}', space=vmem, size = 0x9000, scoped, tag = 'internal scratch']
  %s0 = inlined_call_operand.vmem [shape: f32[8,384], index: 0, kind: input, shape index: {}]
  %s1 = inlined_call_operand.hbm [shape: f32[384,512], index: 1, kind: input, shape index: {}]
  %s2 = inlined_call_operand.vmem [shape: f32[1,512], index: 2, kind: input, shape index: {}]
  %s3 = inlined_call_operand.hbm [shape: f32[512,512], index: 3, kind: input, shape index: {}]
  %s4 = inlined_call_operand.vmem [shape: f32[1,512], index: 4, kind: input, shape index: {}]
  %s5 = inlined_call_operand.hbm [shape: f32[512,128], index: 5, kind: input, shape index: {}]
  %s6 = inlined_call_operand.vmem [shape: f32[1,128], index: 6, kind: input, shape index: {}]
  %s7 = inlined_call_operand.hbm [shape: f32[8,128], index: 7, kind: output, shape index: {}]
  %s8 = sld [smem:[#allocation0]]
  $region50: #{two_layer_mlp_forward.1} parent=0
    _
  %s10 = ssub.s32 1, %s8
  %s11 = scalar_select 0, %s10, %s8
  $region1: #{two_layer_mlp_forward.1} parent=0
    #allocation2 [shape = 'u8[786432]{0}', space=vmem, size = 0xc0000, scoped, tag = 'input window, operand 1, single buffered']
    #allocation3 [shape = 's32[1]{0}', space=sflag, size = 0x4, scoped, tag = 'scoped memory for two_layer_mlp_forward.1']
    #allocation4 [shape = 's32[1]{0}', space=sflag, size = 0x4, scoped, tag = 'scoped memory for two_layer_mlp_forward.1']
    #allocation5 [shape = 'u8[1048576]{0}', space=vmem, size = 0x100000, scoped, tag = 'input window, operand 3, single buffered']
    #allocation6 [shape = 's32[1]{0}', space=sflag, size = 0x4, scoped, tag = 'scoped memory for two_layer_mlp_forward.1']
    #allocation7 [shape = 'u8[262144]{0}', space=vmem, size = 0x40000, scoped, tag = 'input window, operand 5, single buffered']
    #allocation8 [shape = 'u8[4096]{0}', space=vmem, size = 0x1000, scoped, tag = 'output window, operand 0, single buffered']
    %12 = vsyncpa [#allocation3], 0
    %13 = vsyncpa [#allocation6], 0
    %14 = vsyncpa [#allocation4], 0
    // Predicated region
    $region2: #{two_layer_mlp_forward.1} parent=1 // pred_check
      _
    $region3: #{two_layer_mlp_forward.1} parent=1 // pred_check_branch
      %16 = sbr.rel (0) target = $region5
    $region4: #{two_layer_mlp_forward.1} parent=1 // pred_region
      _
    $region5: #{two_layer_mlp_forward.1} parent=1 // pred_fallthru
      _
    // Predicated region
    $region6: #{two_layer_mlp_forward.1} parent=1 // pred_check
      _
    $region7: #{two_layer_mlp_forward.1} parent=1 // pred_check_branch
      %18 = sbr.rel (0) target = $region9
    $region8: #{two_layer_mlp_forward.1} parent=1 // pred_region
      %20 = vsyncadd [#allocation3], 0
      %s21 = sshll.u32 %s1, 4
      %s22 = int_to_ptr.hbm [resolvable:$true] %s21
      %s23 = sshll.u32 [#allocation2], 4
      %s24 = int_to_ptr.vmem [resolvable:$true] %s23
      %29 = dma.hbm_to_vmem [thread:$0]  %s22, 24576, %s24, [#allocation3], 512, 512, 32
    $region9: #{two_layer_mlp_forward.1} parent=1 // pred_fallthru
      _
    // Predicated region
    $region10: #{two_layer_mlp_forward.1} parent=1 // pred_check
      _
    $region11: #{two_layer_mlp_forward.1} parent=1 // pred_check_branch
      %31 = sbr.rel (0) target = $region13
    $region12: #{two_layer_mlp_forward.1} parent=1 // pred_region
      _
    $region13: #{two_layer_mlp_forward.1} parent=1 // pred_fallthru
      _
    // Predicated region
    $region14: #{two_layer_mlp_forward.1} parent=1 // pred_check
      _
    $region15: #{two_layer_mlp_forward.1} parent=1 // pred_check_branch
      %33 = sbr.rel (0) target = $region17
    $region16: #{two_layer_mlp_forward.1} parent=1 // pred_region
      %35 = vsyncadd [#allocation6], 0
      %s36 = sshll.u32 %s3, 4
      %s37 = int_to_ptr.hbm [resolvable:$true] %s36
      %s38 = sshll.u32 [#allocation5], 4
      %s39 = int_to_ptr.vmem [resolvable:$true] %s38
      %44 = dma.hbm_to_vmem [thread:$0]  %s37, 32768, %s39, [#allocation6], 512, 512, 32
    $region17: #{two_layer_mlp_forward.1} parent=1 // pred_fallthru
      _
    // Predicated region
    $region18: #{two_layer_mlp_forward.1} parent=1 // pred_check
      _
    $region19: #{two_layer_mlp_forward.1} parent=1 // pred_check_branch
      %46 = sbr.rel (0) target = $region21
    $region20: #{two_layer_mlp_forward.1} parent=1 // pred_region
      _
    $region21: #{two_layer_mlp_forward.1} parent=1 // pred_fallthru
      _
    // Predicated region
    $region22: #{two_layer_mlp_forward.1} parent=1 // pred_check
      _
    $region23: #{two_layer_mlp_forward.1} parent=1 // pred_check_branch
      %48 = sbr.rel (0) target = $region25
    $region24: #{two_layer_mlp_forward.1} parent=1 // pred_region
      %50 = vsyncadd [#allocation6], 0
      %s51 = sshll.u32 %s5, 4
      %s52 = int_to_ptr.hbm [resolvable:$true] %s51
      %s53 = sshll.u32 [#allocation7], 4
      %s54 = int_to_ptr.vmem [resolvable:$true] %s53
      %59 = dma.hbm_to_vmem [thread:$0]  %s52, 8192, %s54, [#allocation6], 128, 128, 8
    $region25: #{two_layer_mlp_forward.1} parent=1 // pred_fallthru
      _
    // Predicated region
    $region26: #{two_layer_mlp_forward.1} parent=1 // pred_check
      _
    $region27: #{two_layer_mlp_forward.1} parent=1 // pred_check_branch
      %61 = sbr.rel (0) target = $region29
    $region28: #{two_layer_mlp_forward.1} parent=1 // pred_region
      _
    $region29: #{two_layer_mlp_forward.1} parent=1 // pred_fallthru
      _
    // Predicated region
    $region30: #{two_layer_mlp_forward.1} parent=1 // pred_check
      _
    $region31: #{two_layer_mlp_forward.1} parent=1 // pred_check_branch
      %63 = sbr.rel (0) target = $region33
    $region32: #{two_layer_mlp_forward.1} parent=1 // pred_region
      %65 = dma.done [#allocation3], 24576
    $region33: #{two_layer_mlp_forward.1} parent=1 // pred_fallthru
      _
    // Predicated region
    $region34: #{two_layer_mlp_forward.1} parent=1 // pred_check
      _
    $region35: #{two_layer_mlp_forward.1} parent=1 // pred_check_branch
      %67 = sbr.rel (0) target = $region37
    $region36: #{two_layer_mlp_forward.1} parent=1 // pred_region
      %69 = dma.done [#allocation6], 32768
    $region37: #{two_layer_mlp_forward.1} parent=1 // pred_fallthru
      _
    // Predicated region
    $region38: #{two_layer_mlp_forward.1} parent=1 // pred_check
      _
    $region39: #{two_layer_mlp_forward.1} parent=1 // pred_check_branch
      %71 = sbr.rel (0) target = $region41
    $region40: #{two_layer_mlp_forward.1} parent=1 // pred_region
      %73 = dma.done [#allocation6], 8192
    $region41: #{two_layer_mlp_forward.1} parent=1 // pred_fallthru
      _
    %v74 = vld [vmem:[%s0] sm:$0xff]
    %v75 = vld [vmem:[%s0 + $0x8] sm:$0xff]
    %v76 = vld [vmem:[%s0 + $0x10] sm:$0xff]
    %v77 = vld [vmem:[#allocation2] sm:$0xff]
    %v78 = vld [vmem:[#allocation2 + $0x8] sm:$0xff]
    %v79 = vld [vmem:[#allocation2 + $0x10] sm:$0xff]
    %v80 = vld [vmem:[#allocation2 + $0x18] sm:$0xff]
    %v81 = vld [vmem:[#allocation2 + $0x20] sm:$0xff]
    %v82 = vld [vmem:[#allocation2 + $0x28] sm:$0xff]
    %v83 = vld [vmem:[#allocation2 + $0x30] sm:$0xff]
    %v84 = vld [vmem:[#allocation2 + $0x38] sm:$0xff]
    %v85 = vld [vmem:[#allocation2 + $0x40] sm:$0xff]
    %v86 = vld [vmem:[#allocation2 + $0x48] sm:$0xff]
    %v87 = vld [vmem:[#allocation2 + $0x50] sm:$0xff]
    %v88 = vld [vmem:[#allocation2 + $0x58] sm:$0xff]
    %v89 = vld [vmem:[#allocation2 + $0x60] sm:$0xff]
    %v90 = vld [vmem:[#allocation2 + $0x68] sm:$0xff]
    %v91 = vld [vmem:[#allocation2 + $0x70] sm:$0xff]
    %v92 = vld [vmem:[#allocation2 + $0x78] sm:$0xff]
    %v93 = vld [vmem:[#allocation2 + $0x80] sm:$0xff]
    %v94 = vld [vmem:[#allocation2 + $0x88] sm:$0xff]
    %v95 = vld [vmem:[#allocation2 + $0x90] sm:$0xff]
    %v96 = vld [vmem:[#allocation2 + $0x98] sm:$0xff]
    %v97 = vld [vmem:[#allocation2 + $0xa0] sm:$0xff]
    %v98 = vld [vmem:[#allocation2 + $0xa8] sm:$0xff]
    %v99 = vld [vmem:[#allocation2 + $0xb0] sm:$0xff]
    %v100 = vld [vmem:[#allocation2 + $0xb8] sm:$0xff]
    %v101 = vld [vmem:[#allocation2 + $0xc0] sm:$0xff]
    %v102 = vld [vmem:[#allocation2 + $0xc8] sm:$0xff]
    %v103 = vld [vmem:[#allocation2 + $0xd0] sm:$0xff]
    %v104 = vld [vmem:[#allocation2 + $0xd8] sm:$0xff]
    %v105 = vld [vmem:[#allocation2 + $0xe0] sm:$0xff]
    %v106 = vld [vmem:[#allocation2 + $0xe8] sm:$0xff]
    %v107 = vld [vmem:[#allocation2 + $0xf0] sm:$0xff]
    %v108 = vld [vmem:[#allocation2 + $0xf8] sm:$0xff]
    %v109 = vld [vmem:[#allocation2 + $0x100] sm:$0xff]
    %v110 = vld [vmem:[#allocation2 + $0x108] sm:$0xff]
    %v111 = vld [vmem:[#allocation2 + $0x110] sm:$0xff]
    %v112 = vld [vmem:[#allocation2 + $0x118] sm:$0xff]
    %v113 = vld [vmem:[#allocation2 + $0x120] sm:$0xff]
    %v114 = vld [vmem:[#allocation2 + $0x128] sm:$0xff]
    %v115 = vld [vmem:[#allocation2 + $0x130] sm:$0xff]
    %v116 = vld [vmem:[#allocation2 + $0x138] sm:$0xff]
    %v117 = vld [vmem:[#allocation2 + $0x140] sm:$0xff]
    %v118 = vld [vmem:[#allocation2 + $0x148] sm:$0xff]
    %v119 = vld [vmem:[#allocation2 + $0x150] sm:$0xff]
    %v120 = vld [vmem:[#allocation2 + $0x158] sm:$0xff]
    %v121 = vld [vmem:[#allocation2 + $0x160] sm:$0xff]
    %v122 = vld [vmem:[#allocation2 + $0x168] sm:$0xff]
    %v123 = vld [vmem:[#allocation2 + $0x170] sm:$0xff]
    %v124 = vld [vmem:[#allocation2 + $0x178] sm:$0xff]
    %v125 = vld [vmem:[#allocation2 + $0x180] sm:$0xff]
    %v126 = vld [vmem:[#allocation2 + $0x188] sm:$0xff]
    %v127 = vld [vmem:[#allocation2 + $0x190] sm:$0xff]
    %v128 = vld [vmem:[#allocation2 + $0x198] sm:$0xff]
    %v129 = vld [vmem:[#allocation2 + $0x1a0] sm:$0xff]
    %v130 = vld [vmem:[#allocation2 + $0x1a8] sm:$0xff]
    %v131 = vld [vmem:[#allocation2 + $0x1b0] sm:$0xff]
    %v132 = vld [vmem:[#allocation2 + $0x1b8] sm:$0xff]
    %v133 = vld [vmem:[#allocation2 + $0x1c0] sm:$0xff]
    %v134 = vld [vmem:[#allocation2 + $0x1c8] sm:$0xff]
    %v135 = vld [vmem:[#allocation2 + $0x1d0] sm:$0xff]
    %v136 = vld [vmem:[#allocation2 + $0x1d8] sm:$0xff]
    %v137 = vld [vmem:[#allocation2 + $0x1e0] sm:$0xff]
    %v138 = vld [vmem:[#allocation2 + $0x1e8] sm:$0xff]
    %v139 = vld [vmem:[#allocation2 + $0x1f0] sm:$0xff]
    %v140 = vld [vmem:[#allocation2 + $0x1f8] sm:$0xff]
    %v141 = vld [vmem:[#allocation2 + $0x200] sm:$0xff]
    %v142 = vld [vmem:[#allocation2 + $0x208] sm:$0xff]
    %v143 = vld [vmem:[#allocation2 + $0x210] sm:$0xff]
    %v144 = vld [vmem:[#allocation2 + $0x218] sm:$0xff]
    %v145 = vld [vmem:[#allocation2 + $0x220] sm:$0xff]
    %v146 = vld [vmem:[#allocation2 + $0x228] sm:$0xff]
    %v147 = vld [vmem:[#allocation2 + $0x230] sm:$0xff]
    %v148 = vld [vmem:[#allocation2 + $0x238] sm:$0xff]
    %v149 = vld [vmem:[#allocation2 + $0x240] sm:$0xff]
    %v150 = vld [vmem:[#allocation2 + $0x248] sm:$0xff]
    %v151 = vld [vmem:[#allocation2 + $0x250] sm:$0xff]
    %v152 = vld [vmem:[#allocation2 + $0x258] sm:$0xff]
    %v153 = vld [vmem:[#allocation2 + $0x260] sm:$0xff]
    %v154 = vld [vmem:[#allocation2 + $0x268] sm:$0xff]
    %v155 = vld [vmem:[#allocation2 + $0x270] sm:$0xff]
    %v156 = vld [vmem:[#allocation2 + $0x278] sm:$0xff]
    %v157 = vld [vmem:[#allocation2 + $0x280] sm:$0xff]
    %v158 = vld [vmem:[#allocation2 + $0x288] sm:$0xff]
    %v159 = vld [vmem:[#allocation2 + $0x290] sm:$0xff]
    %v160 = vld [vmem:[#allocation2 + $0x298] sm:$0xff]
    %v161 = vld [vmem:[#allocation2 + $0x2a0] sm:$0xff]
    %v162 = vld [vmem:[#allocation2 + $0x2a8] sm:$0xff]
    %v163 = vld [vmem:[#allocation2 + $0x2b0] sm:$0xff]
    %v164 = vld [vmem:[#allocation2 + $0x2b8] sm:$0xff]
    %v165 = vld [vmem:[#allocation2 + $0x2c0] sm:$0xff]
    %v166 = vld [vmem:[#allocation2 + $0x2c8] sm:$0xff]
    %v167 = vld [vmem:[#allocation2 + $0x2d0] sm:$0xff]
    %v168 = vld [vmem:[#allocation2 + $0x2d8] sm:$0xff]
    %v169 = vld [vmem:[#allocation2 + $0x2e0] sm:$0xff]
    %v170 = vld [vmem:[#allocation2 + $0x2e8] sm:$0xff]
    %v171 = vld [vmem:[#allocation2 + $0x2f0] sm:$0xff]
    %v172 = vld [vmem:[#allocation2 + $0x2f8] sm:$0xff]
    %v173 = vld [vmem:[#allocation2 + $0x300] sm:$0xff]
    %v174 = vld [vmem:[#allocation2 + $0x308] sm:$0xff]
    %v175 = vld [vmem:[#allocation2 + $0x310] sm:$0xff]
    %v176 = vld [vmem:[#allocation2 + $0x318] sm:$0xff]
    %v177 = vld [vmem:[#allocation2 + $0x320] sm:$0xff]
    %v178 = vld [vmem:[#allocation2 + $0x328] sm:$0xff]
    %v179 = vld [vmem:[#allocation2 + $0x330] sm:$0xff]
    %v180 = vld [vmem:[#allocation2 + $0x338] sm:$0xff]
    %v181 = vld [vmem:[#allocation2 + $0x340] sm:$0xff]
    %v182 = vld [vmem:[#allocation2 + $0x348] sm:$0xff]
    %v183 = vld [vmem:[#allocation2 + $0x350] sm:$0xff]
    %v184 = vld [vmem:[#allocation2 + $0x358] sm:$0xff]
    %v185 = vld [vmem:[#allocation2 + $0x360] sm:$0xff]
    %v186 = vld [vmem:[#allocation2 + $0x368] sm:$0xff]
    %v187 = vld [vmem:[#allocation2 + $0x370] sm:$0xff]
    %v188 = vld [vmem:[#allocation2 + $0x378] sm:$0xff]
    %v189 = vld [vmem:[#allocation2 + $0x380] sm:$0xff]
    %v190 = vld [vmem:[#allocation2 + $0x388] sm:$0xff]
    %v191 = vld [vmem:[#allocation2 + $0x390] sm:$0xff]
    %v192 = vld [vmem:[#allocation2 + $0x398] sm:$0xff]
    %v193 = vld [vmem:[#allocation2 + $0x3a0] sm:$0xff]
    %v194 = vld [vmem:[#allocation2 + $0x3a8] sm:$0xff]
    %v195 = vld [vmem:[#allocation2 + $0x3b0] sm:$0xff]
    %v196 = vld [vmem:[#allocation2 + $0x3b8] sm:$0xff]
    %v197 = vld [vmem:[#allocation2 + $0x3c0] sm:$0xff]
    %v198 = vld [vmem:[#allocation2 + $0x3c8] sm:$0xff]
    %v199 = vld [vmem:[#allocation2 + $0x3d0] sm:$0xff]
    %v200 = vld [vmem:[#allocation2 + $0x3d8] sm:$0xff]
    %v201 = vld [vmem:[#allocation2 + $0x3e0] sm:$0xff]
    %v202 = vld [vmem:[#allocation2 + $0x3e8] sm:$0xff]
    %v203 = vld [vmem:[#allocation2 + $0x3f0] sm:$0xff]
    %v204 = vld [vmem:[#allocation2 + $0x3f8] sm:$0xff]
    %v205 = vld [vmem:[#allocation2 + $0x400] sm:$0xff]
    %v206 = vld [vmem:[#allocation2 + $0x408] sm:$0xff]
    %v207 = vld [vmem:[#allocation2 + $0x410] sm:$0xff]
    %v208 = vld [vmem:[#allocation2 + $0x418] sm:$0xff]
    %v209 = vld [vmem:[#allocation2 + $0x420] sm:$0xff]
    %v210 = vld [vmem:[#allocation2 + $0x428] sm:$0xff]
    %v211 = vld [vmem:[#allocation2 + $0x430] sm:$0xff]
    %v212 = vld [vmem:[#allocation2 + $0x438] sm:$0xff]
    %v213 = vld [vmem:[#allocation2 + $0x440] sm:$0xff]
    %v214 = vld [vmem:[#allocation2 + $0x448] sm:$0xff]
    %v215 = vld [vmem:[#allocation2 + $0x450] sm:$0xff]
    %v216 = vld [vmem:[#allocation2 + $0x458] sm:$0xff]
    %v217 = vld [vmem:[#allocation2 + $0x460] sm:$0xff]
    %v218 = vld [vmem:[#allocation2 + $0x468] sm:$0xff]
    %v219 = vld [vmem:[#allocation2 + $0x470] sm:$0xff]
    %v220 = vld [vmem:[#allocation2 + $0x478] sm:$0xff]
    %v221 = vld [vmem:[#allocation2 + $0x480] sm:$0xff]
    %v222 = vld [vmem:[#allocation2 + $0x488] sm:$0xff]
    %v223 = vld [vmem:[#allocation2 + $0x490] sm:$0xff]
    %v224 = vld [vmem:[#allocation2 + $0x498] sm:$0xff]
    %v225 = vld [vmem:[#allocation2 + $0x4a0] sm:$0xff]
    %v226 = vld [vmem:[#allocation2 + $0x4a8] sm:$0xff]
    %v227 = vld [vmem:[#allocation2 + $0x4b0] sm:$0xff]
    %v228 = vld [vmem:[#allocation2 + $0x4b8] sm:$0xff]
    %v229 = vld [vmem:[#allocation2 + $0x4c0] sm:$0xff]
    %v230 = vld [vmem:[#allocation2 + $0x4c8] sm:$0xff]
    %v231 = vld [vmem:[#allocation2 + $0x4d0] sm:$0xff]
    %v232 = vld [vmem:[#allocation2 + $0x4d8] sm:$0xff]
    %v233 = vld [vmem:[#allocation2 + $0x4e0] sm:$0xff]
    %v234 = vld [vmem:[#allocation2 + $0x4e8] sm:$0xff]
    %v235 = vld [vmem:[#allocation2 + $0x4f0] sm:$0xff]
    %v236 = vld [vmem:[#allocation2 + $0x4f8] sm:$0xff]
    %v237 = vld [vmem:[#allocation2 + $0x500] sm:$0xff]
    %v238 = vld [vmem:[#allocation2 + $0x508] sm:$0xff]
    %v239 = vld [vmem:[#allocation2 + $0x510] sm:$0xff]
    %v240 = vld [vmem:[#allocation2 + $0x518] sm:$0xff]
    %v241 = vld [vmem:[#allocation2 + $0x520] sm:$0xff]
    %v242 = vld [vmem:[#allocation2 + $0x528] sm:$0xff]
    %v243 = vld [vmem:[#allocation2 + $0x530] sm:$0xff]
    %v244 = vld [vmem:[#allocation2 + $0x538] sm:$0xff]
    %v245 = vld [vmem:[#allocation2 + $0x540] sm:$0xff]
    %v246 = vld [vmem:[#allocation2 + $0x548] sm:$0xff]
    %v247 = vld [vmem:[#allocation2 + $0x550] sm:$0xff]
    %v248 = vld [vmem:[#allocation2 + $0x558] sm:$0xff]
    %v249 = vld [vmem:[#allocation2 + $0x560] sm:$0xff]
    %v250 = vld [vmem:[#allocation2 + $0x568] sm:$0xff]
    %v251 = vld [vmem:[#allocation2 + $0x570] sm:$0xff]
    %v252 = vld [vmem:[#allocation2 + $0x578] sm:$0xff]
    %v253 = vld [vmem:[#allocation2 + $0x580] sm:$0xff]
    %v254 = vld [vmem:[#allocation2 + $0x588] sm:$0xff]
    %v255 = vld [vmem:[#allocation2 + $0x590] sm:$0xff]
    %v256 = vld [vmem:[#allocation2 + $0x598] sm:$0xff]
    %v257 = vld [vmem:[#allocation2 + $0x5a0] sm:$0xff]
    %v258 = vld [vmem:[#allocation2 + $0x5a8] sm:$0xff]
    %v259 = vld [vmem:[#allocation2 + $0x5b0] sm:$0xff]
    %v260 = vld [vmem:[#allocation2 + $0x5b8] sm:$0xff]
    %v261 = vld [vmem:[#allocation2 + $0x5c0] sm:$0xff]
    %v262 = vld [vmem:[#allocation2 + $0x5c8] sm:$0xff]
    %v263 = vld [vmem:[#allocation2 + $0x5d0] sm:$0xff]
    %v264 = vld [vmem:[#allocation2 + $0x5d8] sm:$0xff]
    %v265 = vld [vmem:[#allocation2 + $0x5e0] sm:$0xff]
    %v266 = vld [vmem:[#allocation2 + $0x5e8] sm:$0xff]
    %v267 = vld [vmem:[#allocation2 + $0x5f0] sm:$0xff]
    %v268 = vld [vmem:[#allocation2 + $0x5f8] sm:$0xff]
    %v269 = vld [vmem:[%s2] sm:$0xf]
    %v271 = vperm.slane %v269, 0
    %v272 = vperm.slane %v269, 1
    %v273 = vperm.slane %v269, 2
    %v274 = vperm.slane %v269, 3
    %279 = vmatpush.msra.mxu0 %v137
    %280 = vmatpush.msra.mxu0 %v133
    %281 = vmatpush.msra.mxu0 %v129
    %282 = vmatpush.msra.mxu0 %v125
    %283 = vmatpush.msra.mxu0 %v121
    %284 = vmatpush.msra.mxu0 %v117
    %285 = vmatpush.msra.mxu0 %v113
    %286 = vmatpush.msra.mxu0 %v109
    %287 = vmatpush.msra.mxu0 %v105
    %288 = vmatpush.msra.mxu0 %v101
    %289 = vmatpush.msra.mxu0 %v97
    %290 = vmatpush.msra.mxu0 %v93
    %291 = vmatpush.msra.mxu0 %v89
    %292 = vmatpush.msra.mxu0 %v85
    %293 = vmatpush.msra.mxu0 %v81
    %294 = vmatpush.msra.mxu0 %v77
    %295 = vmatmul.f32.gmra.mxu0 %v74
    %v296 = vpop.f32.mrf.mxu0
    %v297 = vadd.f32 %v271, %v296
    %298 = vdwg.mxu0
    %299 = vmatpush.msra.mxu0 %v201
    %300 = vmatpush.msra.mxu0 %v197
    %301 = vmatpush.msra.mxu0 %v193
    %302 = vmatpush.msra.mxu0 %v189
    %303 = vmatpush.msra.mxu0 %v185
    %304 = vmatpush.msra.mxu0 %v181
    %305 = vmatpush.msra.mxu0 %v177
    %306 = vmatpush.msra.mxu0 %v173
    %307 = vmatpush.msra.mxu0 %v169
    %308 = vmatpush.msra.mxu0 %v165
    %309 = vmatpush.msra.mxu0 %v161
    %310 = vmatpush.msra.mxu0 %v157
    %311 = vmatpush.msra.mxu0 %v153
    %312 = vmatpush.msra.mxu0 %v149
    %313 = vmatpush.msra.mxu0 %v145
    %314 = vmatpush.msra.mxu0 %v141
    %315 = vmatmul.f32.gmra.mxu0 %v75
    %v316 = vpop.f32.mrf.mxu0
    %v317 = vadd.f32 %v297, %v316
    %318 = vdwg.mxu0
    %319 = vmatpush.msra.mxu0 %v265
    %320 = vmatpush.msra.mxu0 %v261
    %321 = vmatpush.msra.mxu0 %v257
    %322 = vmatpush.msra.mxu0 %v253
    %323 = vmatpush.msra.mxu0 %v249
    %324 = vmatpush.msra.mxu0 %v245
    %325 = vmatpush.msra.mxu0 %v241
    %326 = vmatpush.msra.mxu0 %v237
    %327 = vmatpush.msra.mxu0 %v233
    %328 = vmatpush.msra.mxu0 %v229
    %329 = vmatpush.msra.mxu0 %v225
    %330 = vmatpush.msra.mxu0 %v221
    %331 = vmatpush.msra.mxu0 %v217
    %332 = vmatpush.msra.mxu0 %v213
    %333 = vmatpush.msra.mxu0 %v209
    %334 = vmatpush.msra.mxu0 %v205
    %335 = vmatmul.f32.gmra.mxu0 %v76
    %v336 = vpop.f32.mrf.mxu0
    %v337 = vadd.f32 %v317, %v336
    %338 = vdwg.mxu0
    %339 = vmatpush.msra.mxu0 %v138
    %340 = vmatpush.msra.mxu0 %v134
    %341 = vmatpush.msra.mxu0 %v130
    %342 = vmatpush.msra.mxu0 %v126
    %343 = vmatpush.msra.mxu0 %v122
    %344 = vmatpush.msra.mxu0 %v118
    %345 = vmatpush.msra.mxu0 %v114
    %346 = vmatpush.msra.mxu0 %v110
    %347 = vmatpush.msra.mxu0 %v106
    %348 = vmatpush.msra.mxu0 %v102
    %349 = vmatpush.msra.mxu0 %v98
    %350 = vmatpush.msra.mxu0 %v94
    %351 = vmatpush.msra.mxu0 %v90
    %352 = vmatpush.msra.mxu0 %v86
    %353 = vmatpush.msra.mxu0 %v82
    %354 = vmatpush.msra.mxu0 %v78
    %355 = vmatmul.f32.gmra.mxu0 %v74
    %v356 = vpop.f32.mrf.mxu0
    %v357 = vadd.f32 %v272, %v356
    %358 = vdwg.mxu0
    %359 = vmatpush.msra.mxu0 %v202
    %360 = vmatpush.msra.mxu0 %v198
    %361 = vmatpush.msra.mxu0 %v194
    %362 = vmatpush.msra.mxu0 %v190
    %363 = vmatpush.msra.mxu0 %v186
    %364 = vmatpush.msra.mxu0 %v182
    %365 = vmatpush.msra.mxu0 %v178
    %366 = vmatpush.msra.mxu0 %v174
    %367 = vmatpush.msra.mxu0 %v170
    %368 = vmatpush.msra.mxu0 %v166
    %369 = vmatpush.msra.mxu0 %v162
    %370 = vmatpush.msra.mxu0 %v158
    %371 = vmatpush.msra.mxu0 %v154
    %372 = vmatpush.msra.mxu0 %v150
    %373 = vmatpush.msra.mxu0 %v146
    %374 = vmatpush.msra.mxu0 %v142
    %375 = vmatmul.f32.gmra.mxu0 %v75
    %v376 = vpop.f32.mrf.mxu0
    %v377 = vadd.f32 %v357, %v376
    %378 = vdwg.mxu0
    %379 = vmatpush.msra.mxu0 %v266
    %380 = vmatpush.msra.mxu0 %v262
    %381 = vmatpush.msra.mxu0 %v258
    %382 = vmatpush.msra.mxu0 %v254
    %383 = vmatpush.msra.mxu0 %v250
    %384 = vmatpush.msra.mxu0 %v246
    %385 = vmatpush.msra.mxu0 %v242
    %386 = vmatpush.msra.mxu0 %v238
    %387 = vmatpush.msra.mxu0 %v234
    %388 = vmatpush.msra.mxu0 %v230
    %389 = vmatpush.msra.mxu0 %v226
    %390 = vmatpush.msra.mxu0 %v222
    %391 = vmatpush.msra.mxu0 %v218
    %392 = vmatpush.msra.mxu0 %v214
    %393 = vmatpush.msra.mxu0 %v210
    %394 = vmatpush.msra.mxu0 %v206
    %395 = vmatmul.f32.gmra.mxu0 %v76
    %v396 = vpop.f32.mrf.mxu0
    %v397 = vadd.f32 %v377, %v396
    %398 = vdwg.mxu0
    %399 = vmatpush.msra.mxu0 %v139
    %400 = vmatpush.msra.mxu0 %v135
    %401 = vmatpush.msra.mxu0 %v131
    %402 = vmatpush.msra.mxu0 %v127
    %403 = vmatpush.msra.mxu0 %v123
    %404 = vmatpush.msra.mxu0 %v119
    %405 = vmatpush.msra.mxu0 %v115
    %406 = vmatpush.msra.mxu0 %v111
    %407 = vmatpush.msra.mxu0 %v107
    %408 = vmatpush.msra.mxu0 %v103
    %409 = vmatpush.msra.mxu0 %v99
    %410 = vmatpush.msra.mxu0 %v95
    %411 = vmatpush.msra.mxu0 %v91
    %412 = vmatpush.msra.mxu0 %v87
    %413 = vmatpush.msra.mxu0 %v83
    %414 = vmatpush.msra.mxu0 %v79
    %415 = vmatmul.f32.gmra.mxu0 %v74
    %v416 = vpop.f32.mrf.mxu0
    %v417 = vadd.f32 %v273, %v416
    %418 = vdwg.mxu0
    %419 = vmatpush.msra.mxu0 %v203
    %420 = vmatpush.msra.mxu0 %v199
    %421 = vmatpush.msra.mxu0 %v195
    %422 = vmatpush.msra.mxu0 %v191
    %423 = vmatpush.msra.mxu0 %v187
    %424 = vmatpush.msra.mxu0 %v183
    %425 = vmatpush.msra.mxu0 %v179
    %426 = vmatpush.msra.mxu0 %v175
    %427 = vmatpush.msra.mxu0 %v171
    %428 = vmatpush.msra.mxu0 %v167
    %429 = vmatpush.msra.mxu0 %v163
    %430 = vmatpush.msra.mxu0 %v159
    %431 = vmatpush.msra.mxu0 %v155
    %432 = vmatpush.msra.mxu0 %v151
    %433 = vmatpush.msra.mxu0 %v147
    %434 = vmatpush.msra.mxu0 %v143
    %435 = vmatmul.f32.gmra.mxu0 %v75
    %v436 = vpop.f32.mrf.mxu0
    %v437 = vadd.f32 %v417, %v436
    %438 = vdwg.mxu0
    %439 = vmatpush.msra.mxu0 %v267
    %440 = vmatpush.msra.mxu0 %v263
    %441 = vmatpush.msra.mxu0 %v259
    %442 = vmatpush.msra.mxu0 %v255
    %443 = vmatpush.msra.mxu0 %v251
    %444 = vmatpush.msra.mxu0 %v247
    %445 = vmatpush.msra.mxu0 %v243
    %446 = vmatpush.msra.mxu0 %v239
    %447 = vmatpush.msra.mxu0 %v235
    %448 = vmatpush.msra.mxu0 %v231
    %449 = vmatpush.msra.mxu0 %v227
    %450 = vmatpush.msra.mxu0 %v223
    %451 = vmatpush.msra.mxu0 %v219
    %452 = vmatpush.msra.mxu0 %v215
    %453 = vmatpush.msra.mxu0 %v211
    %454 = vmatpush.msra.mxu0 %v207
    %455 = vmatmul.f32.gmra.mxu0 %v76
    %v456 = vpop.f32.mrf.mxu0
    %v457 = vadd.f32 %v437, %v456
    %458 = vdwg.mxu0
    %459 = vmatpush.msra.mxu0 %v140
    %460 = vmatpush.msra.mxu0 %v136
    %461 = vmatpush.msra.mxu0 %v132
    %462 = vmatpush.msra.mxu0 %v128
    %463 = vmatpush.msra.mxu0 %v124
    %464 = vmatpush.msra.mxu0 %v120
    %465 = vmatpush.msra.mxu0 %v116
    %466 = vmatpush.msra.mxu0 %v112
    %467 = vmatpush.msra.mxu0 %v108
    %468 = vmatpush.msra.mxu0 %v104
    %469 = vmatpush.msra.mxu0 %v100
    %470 = vmatpush.msra.mxu0 %v96
    %471 = vmatpush.msra.mxu0 %v92
    %472 = vmatpush.msra.mxu0 %v88
    %473 = vmatpush.msra.mxu0 %v84
    %474 = vmatpush.msra.mxu0 %v80
    %475 = vmatmul.f32.gmra.mxu0 %v74
    %v476 = vpop.f32.mrf.mxu0
    %v477 = vadd.f32 %v274, %v476
    %478 = vdwg.mxu0
    %479 = vmatpush.msra.mxu0 %v204
    %480 = vmatpush.msra.mxu0 %v200
    %481 = vmatpush.msra.mxu0 %v196
    %482 = vmatpush.msra.mxu0 %v192
    %483 = vmatpush.msra.mxu0 %v188
    %484 = vmatpush.msra.mxu0 %v184
    %485 = vmatpush.msra.mxu0 %v180
    %486 = vmatpush.msra.mxu0 %v176
    %487 = vmatpush.msra.mxu0 %v172
    %488 = vmatpush.msra.mxu0 %v168
    %489 = vmatpush.msra.mxu0 %v164
    %490 = vmatpush.msra.mxu0 %v160
    %491 = vmatpush.msra.mxu0 %v156
    %492 = vmatpush.msra.mxu0 %v152
    %493 = vmatpush.msra.mxu0 %v148
    %494 = vmatpush.msra.mxu0 %v144
    %495 = vmatmul.f32.gmra.mxu0 %v75
    %v496 = vpop.f32.mrf.mxu0
    %v497 = vadd.f32 %v477, %v496
    %498 = vdwg.mxu0
    %499 = vmatpush.msra.mxu0 %v268
    %500 = vmatpush.msra.mxu0 %v264
    %501 = vmatpush.msra.mxu0 %v260
    %502 = vmatpush.msra.mxu0 %v256
    %503 = vmatpush.msra.mxu0 %v252
    %504 = vmatpush.msra.mxu0 %v248
    %505 = vmatpush.msra.mxu0 %v244
    %506 = vmatpush.msra.mxu0 %v240
    %507 = vmatpush.msra.mxu0 %v236
    %508 = vmatpush.msra.mxu0 %v232
    %509 = vmatpush.msra.mxu0 %v228
    %510 = vmatpush.msra.mxu0 %v224
    %511 = vmatpush.msra.mxu0 %v220
    %512 = vmatpush.msra.mxu0 %v216
    %513 = vmatpush.msra.mxu0 %v212
    %514 = vmatpush.msra.mxu0 %v208
    %515 = vmatmul.f32.gmra.mxu0 %v76
    %v516 = vpop.f32.mrf.mxu0
    %v517 = vadd.f32 %v497, %v516
    %518 = vdwg.mxu0
    %v519 = vmax.f32 %v337, 0.0
    %v520 = vmax.f32 %v397, 0.0
    %v521 = vmax.f32 %v457, 0.0
    %v522 = vmax.f32 %v517, 0.0
    %v523 = vld [vmem:[#allocation5] sm:$0xff]
    %v524 = vld [vmem:[#allocation5 + $0x8] sm:$0xff]
    %v525 = vld [vmem:[#allocation5 + $0x10] sm:$0xff]
    %v526 = vld [vmem:[#allocation5 + $0x18] sm:$0xff]
    %v527 = vld [vmem:[#allocation5 + $0x20] sm:$0xff]
    %v528 = vld [vmem:[#allocation5 + $0x28] sm:$0xff]
    %v529 = vld [vmem:[#allocation5 + $0x30] sm:$0xff]
    %v530 = vld [vmem:[#allocation5 + $0x38] sm:$0xff]
    %v531 = vld [vmem:[#allocation5 + $0x40] sm:$0xff]
    %v532 = vld [vmem:[#allocation5 + $0x48] sm:$0xff]
    %v533 = vld [vmem:[#allocation5 + $0x50] sm:$0xff]
    %v534 = vld [vmem:[#allocation5 + $0x58] sm:$0xff]
    %v535 = vld [vmem:[#allocation5 + $0x60] sm:$0xff]
    %v536 = vld [vmem:[#allocation5 + $0x68] sm:$0xff]
    %v537 = vld [vmem:[#allocation5 + $0x70] sm:$0xff]
    %v538 = vld [vmem:[#allocation5 + $0x78] sm:$0xff]
    %v539 = vld [vmem:[#allocation5 + $0x80] sm:$0xff]
    %v540 = vld [vmem:[#allocation5 + $0x88] sm:$0xff]
    %v541 = vld [vmem:[#allocation5 + $0x90] sm:$0xff]
    %v542 = vld [vmem:[#allocation5 + $0x98] sm:$0xff]
    %v543 = vld [vmem:[#allocation5 + $0xa0] sm:$0xff]
    %v544 = vld [vmem:[#allocation5 + $0xa8] sm:$0xff]
    %v545 = vld [vmem:[#allocation5 + $0xb0] sm:$0xff]
    %v546 = vld [vmem:[#allocation5 + $0xb8] sm:$0xff]
    %v547 = vld [vmem:[#allocation5 + $0xc0] sm:$0xff]
    %v548 = vld [vmem:[#allocation5 + $0xc8] sm:$0xff]
    %v549 = vld [vmem:[#allocation5 + $0xd0] sm:$0xff]
    %v550 = vld [vmem:[#allocation5 + $0xd8] sm:$0xff]
    %v551 = vld [vmem:[#allocation5 + $0xe0] sm:$0xff]
    %v552 = vld [vmem:[#allocation5 + $0xe8] sm:$0xff]
    %v553 = vld [vmem:[#allocation5 + $0xf0] sm:$0xff]
    %v554 = vld [vmem:[#allocation5 + $0xf8] sm:$0xff]
    %v555 = vld [vmem:[#allocation5 + $0x100] sm:$0xff]
    %v556 = vld [vmem:[#allocation5 + $0x108] sm:$0xff]
    %v557 = vld [vmem:[#allocation5 + $0x110] sm:$0xff]
    %v558 = vld [vmem:[#allocation5 + $0x118] sm:$0xff]
    %v559 = vld [vmem:[#allocation5 + $0x120] sm:$0xff]
    %v560 = vld [vmem:[#allocation5 + $0x128] sm:$0xff]
    %v561 = vld [vmem:[#allocation5 + $0x130] sm:$0xff]
    %v562 = vld [vmem:[#allocation5 + $0x138] sm:$0xff]
    %v563 = vld [vmem:[#allocation5 + $0x140] sm:$0xff]
    %v564 = vld [vmem:[#allocation5 + $0x148] sm:$0xff]
    %v565 = vld [vmem:[#allocation5 + $0x150] sm:$0xff]
    %v566 = vld [vmem:[#allocation5 + $0x158] sm:$0xff]
    %v567 = vld [vmem:[#allocation5 + $0x160] sm:$0xff]
    %v568 = vld [vmem:[#allocation5 + $0x168] sm:$0xff]
    %v569 = vld [vmem:[#allocation5 + $0x170] sm:$0xff]
    %v570 = vld [vmem:[#allocation5 + $0x178] sm:$0xff]
    %v571 = vld [vmem:[#allocation5 + $0x180] sm:$0xff]
    %v572 = vld [vmem:[#allocation5 + $0x188] sm:$0xff]
    %v573 = vld [vmem:[#allocation5 + $0x190] sm:$0xff]
    %v574 = vld [vmem:[#allocation5 + $0x198] sm:$0xff]
    %v575 = vld [vmem:[#allocation5 + $0x1a0] sm:$0xff]
    %v576 = vld [vmem:[#allocation5 + $0x1a8] sm:$0xff]
    %v577 = vld [vmem:[#allocation5 + $0x1b0] sm:$0xff]
    %v578 = vld [vmem:[#allocation5 + $0x1b8] sm:$0xff]
    %v579 = vld [vmem:[#allocation5 + $0x1c0] sm:$0xff]
    %v580 = vld [vmem:[#allocation5 + $0x1c8] sm:$0xff]
    %v581 = vld [vmem:[#allocation5 + $0x1d0] sm:$0xff]
    %v582 = vld [vmem:[#allocation5 + $0x1d8] sm:$0xff]
    %v583 = vld [vmem:[#allocation5 + $0x1e0] sm:$0xff]
    %v584 = vld [vmem:[#allocation5 + $0x1e8] sm:$0xff]
    %v585 = vld [vmem:[#allocation5 + $0x1f0] sm:$0xff]
    %v586 = vld [vmem:[#allocation5 + $0x1f8] sm:$0xff]
    %v587 = vld [vmem:[#allocation5 + $0x200] sm:$0xff]
    %v588 = vld [vmem:[#allocation5 + $0x208] sm:$0xff]
    %v589 = vld [vmem:[#allocation5 + $0x210] sm:$0xff]
    %v590 = vld [vmem:[#allocation5 + $0x218] sm:$0xff]
    %v591 = vld [vmem:[#allocation5 + $0x220] sm:$0xff]
    %v592 = vld [vmem:[#allocation5 + $0x228] sm:$0xff]
    %v593 = vld [vmem:[#allocation5 + $0x230] sm:$0xff]
    %v594 = vld [vmem:[#allocation5 + $0x238] sm:$0xff]
    %v595 = vld [vmem:[#allocation5 + $0x240] sm:$0xff]
    %v596 = vld [vmem:[#allocation5 + $0x248] sm:$0xff]
    %v597 = vld [vmem:[#allocation5 + $0x250] sm:$0xff]
    %v598 = vld [vmem:[#allocation5 + $0x258] sm:$0xff]
    %v599 = vld [vmem:[#allocation5 + $0x260] sm:$0xff]
    %v600 = vld [vmem:[#allocation5 + $0x268] sm:$0xff]
    %v601 = vld [vmem:[#allocation5 + $0x270] sm:$0xff]
    %v602 = vld [vmem:[#allocation5 + $0x278] sm:$0xff]
    %v603 = vld [vmem:[#allocation5 + $0x280] sm:$0xff]
    %v604 = vld [vmem:[#allocation5 + $0x288] sm:$0xff]
    %v605 = vld [vmem:[#allocation5 + $0x290] sm:$0xff]
    %v606 = vld [vmem:[#allocation5 + $0x298] sm:$0xff]
    %v607 = vld [vmem:[#allocation5 + $0x2a0] sm:$0xff]
    %v608 = vld [vmem:[#allocation5 + $0x2a8] sm:$0xff]
    %v609 = vld [vmem:[#allocation5 + $0x2b0] sm:$0xff]
    %v610 = vld [vmem:[#allocation5 + $0x2b8] sm:$0xff]
    %v611 = vld [vmem:[#allocation5 + $0x2c0] sm:$0xff]
    %v612 = vld [vmem:[#allocation5 + $0x2c8] sm:$0xff]
    %v613 = vld [vmem:[#allocation5 + $0x2d0] sm:$0xff]
    %v614 = vld [vmem:[#allocation5 + $0x2d8] sm:$0xff]
    %v615 = vld [vmem:[#allocation5 + $0x2e0] sm:$0xff]
    %v616 = vld [vmem:[#allocation5 + $0x2e8] sm:$0xff]
    %v617 = vld [vmem:[#allocation5 + $0x2f0] sm:$0xff]
    %v618 = vld [vmem:[#allocation5 + $0x2f8] sm:$0xff]
    %v619 = vld [vmem:[#allocation5 + $0x300] sm:$0xff]
    %v620 = vld [vmem:[#allocation5 + $0x308] sm:$0xff]
    %v621 = vld [vmem:[#allocation5 + $0x310] sm:$0xff]
    %v622 = vld [vmem:[#allocation5 + $0x318] sm:$0xff]
    %v623 = vld [vmem:[#allocation5 + $0x320] sm:$0xff]
    %v624 = vld [vmem:[#allocation5 + $0x328] sm:$0xff]
    %v625 = vld [vmem:[#allocation5 + $0x330] sm:$0xff]
    %v626 = vld [vmem:[#allocation5 + $0x338] sm:$0xff]
    %v627 = vld [vmem:[#allocation5 + $0x340] sm:$0xff]
    %v628 = vld [vmem:[#allocation5 + $0x348] sm:$0xff]
    %v629 = vld [vmem:[#allocation5 + $0x350] sm:$0xff]
    %v630 = vld [vmem:[#allocation5 + $0x358] sm:$0xff]
    %v631 = vld [vmem:[#allocation5 + $0x360] sm:$0xff]
    %v632 = vld [vmem:[#allocation5 + $0x368] sm:$0xff]
    %v633 = vld [vmem:[#allocation5 + $0x370] sm:$0xff]
    %v634 = vld [vmem:[#allocation5 + $0x378] sm:$0xff]
    %v635 = vld [vmem:[#allocation5 + $0x380] sm:$0xff]
    %v636 = vld [vmem:[#allocation5 + $0x388] sm:$0xff]
    %v637 = vld [vmem:[#allocation5 + $0x390] sm:$0xff]
    %v638 = vld [vmem:[#allocation5 + $0x398] sm:$0xff]
    %v639 = vld [vmem:[#allocation5 + $0x3a0] sm:$0xff]
    %v640 = vld [vmem:[#allocation5 + $0x3a8] sm:$0xff]
    %v641 = vld [vmem:[#allocation5 + $0x3b0] sm:$0xff]
    %v642 = vld [vmem:[#allocation5 + $0x3b8] sm:$0xff]
    %v643 = vld [vmem:[#allocation5 + $0x3c0] sm:$0xff]
    %v644 = vld [vmem:[#allocation5 + $0x3c8] sm:$0xff]
    %v645 = vld [vmem:[#allocation5 + $0x3d0] sm:$0xff]
    %v646 = vld [vmem:[#allocation5 + $0x3d8] sm:$0xff]
    %v647 = vld [vmem:[#allocation5 + $0x3e0] sm:$0xff]
    %v648 = vld [vmem:[#allocation5 + $0x3e8] sm:$0xff]
    %v649 = vld [vmem:[#allocation5 + $0x3f0] sm:$0xff]
    %v650 = vld [vmem:[#allocation5 + $0x3f8] sm:$0xff]
    %v651 = vld [vmem:[#allocation5 + $0x400] sm:$0xff]
    %v652 = vld [vmem:[#allocation5 + $0x408] sm:$0xff]
    %v653 = vld [vmem:[#allocation5 + $0x410] sm:$0xff]
    %v654 = vld [vmem:[#allocation5 + $0x418] sm:$0xff]
    %v655 = vld [vmem:[#allocation5 + $0x420] sm:$0xff]
    %v656 = vld [vmem:[#allocation5 + $0x428] sm:$0xff]
    %v657 = vld [vmem:[#allocation5 + $0x430] sm:$0xff]
    %v658 = vld [vmem:[#allocation5 + $0x438] sm:$0xff]
    %v659 = vld [vmem:[#allocation5 + $0x440] sm:$0xff]
    %v660 = vld [vmem:[#allocation5 + $0x448] sm:$0xff]
    %v661 = vld [vmem:[#allocation5 + $0x450] sm:$0xff]
    %v662 = vld [vmem:[#allocation5 + $0x458] sm:$0xff]
    %v663 = vld [vmem:[#allocation5 + $0x460] sm:$0xff]
    %v664 = vld [vmem:[#allocation5 + $0x468] sm:$0xff]
    %v665 = vld [vmem:[#allocation5 + $0x470] sm:$0xff]
    %v666 = vld [vmem:[#allocation5 + $0x478] sm:$0xff]
    %v667 = vld [vmem:[#allocation5 + $0x480] sm:$0xff]
    %v668 = vld [vmem:[#allocation5 + $0x488] sm:$0xff]
    %v669 = vld [vmem:[#allocation5 + $0x490] sm:$0xff]
    %v670 = vld [vmem:[#allocation5 + $0x498] sm:$0xff]
    %v671 = vld [vmem:[#allocation5 + $0x4a0] sm:$0xff]
    %v672 = vld [vmem:[#allocation5 + $0x4a8] sm:$0xff]
    %v673 = vld [vmem:[#allocation5 + $0x4b0] sm:$0xff]
    %v674 = vld [vmem:[#allocation5 + $0x4b8] sm:$0xff]
    %v675 = vld [vmem:[#allocation5 + $0x4c0] sm:$0xff]
    %v676 = vld [vmem:[#allocation5 + $0x4c8] sm:$0xff]
    %v677 = vld [vmem:[#allocation5 + $0x4d0] sm:$0xff]
    %v678 = vld [vmem:[#allocation5 + $0x4d8] sm:$0xff]
    %v679 = vld [vmem:[#allocation5 + $0x4e0] sm:$0xff]
    %v680 = vld [vmem:[#allocation5 + $0x4e8] sm:$0xff]
    %v681 = vld [vmem:[#allocation5 + $0x4f0] sm:$0xff]
    %v682 = vld [vmem:[#allocation5 + $0x4f8] sm:$0xff]
    %v683 = vld [vmem:[#allocation5 + $0x500] sm:$0xff]
    %v684 = vld [vmem:[#allocation5 + $0x508] sm:$0xff]
    %v685 = vld [vmem:[#allocation5 + $0x510] sm:$0xff]
    %v686 = vld [vmem:[#allocation5 + $0x518] sm:$0xff]
    %v687 = vld [vmem:[#allocation5 + $0x520] sm:$0xff]
    %v688 = vld [vmem:[#allocation5 + $0x528] sm:$0xff]
    %v689 = vld [vmem:[#allocation5 + $0x530] sm:$0xff]
    %v690 = vld [vmem:[#allocation5 + $0x538] sm:$0xff]
    %v691 = vld [vmem:[#allocation5 + $0x540] sm:$0xff]
    %v692 = vld [vmem:[#allocation5 + $0x548] sm:$0xff]
    %v693 = vld [vmem:[#allocation5 + $0x550] sm:$0xff]
    %v694 = vld [vmem:[#allocation5 + $0x558] sm:$0xff]
    %v695 = vld [vmem:[#allocation5 + $0x560] sm:$0xff]
    %v696 = vld [vmem:[#allocation5 + $0x568] sm:$0xff]
    %v697 = vld [vmem:[#allocation5 + $0x570] sm:$0xff]
    %v698 = vld [vmem:[#allocation5 + $0x578] sm:$0xff]
    %v699 = vld [vmem:[#allocation5 + $0x580] sm:$0xff]
    %v700 = vld [vmem:[#allocation5 + $0x588] sm:$0xff]
    %v701 = vld [vmem:[#allocation5 + $0x590] sm:$0xff]
    %v702 = vld [vmem:[#allocation5 + $0x598] sm:$0xff]
    %v703 = vld [vmem:[#allocation5 + $0x5a0] sm:$0xff]
    %v704 = vld [vmem:[#allocation5 + $0x5a8] sm:$0xff]
    %v705 = vld [vmem:[#allocation5 + $0x5b0] sm:$0xff]
    %v706 = vld [vmem:[#allocation5 + $0x5b8] sm:$0xff]
    %v707 = vld [vmem:[#allocation5 + $0x5c0] sm:$0xff]
    %v708 = vld [vmem:[#allocation5 + $0x5c8] sm:$0xff]
    %v709 = vld [vmem:[#allocation5 + $0x5d0] sm:$0xff]
    %v710 = vld [vmem:[#allocation5 + $0x5d8] sm:$0xff]
    %v711 = vld [vmem:[#allocation5 + $0x5e0] sm:$0xff]
    %v712 = vld [vmem:[#allocation5 + $0x5e8] sm:$0xff]
    %v713 = vld [vmem:[#allocation5 + $0x5f0] sm:$0xff]
    %v714 = vld [vmem:[#allocation5 + $0x5f8] sm:$0xff]
    %v715 = vld [vmem:[#allocation5 + $0x600] sm:$0xff]
    %v716 = vld [vmem:[#allocation5 + $0x608] sm:$0xff]
    %v717 = vld [vmem:[#allocation5 + $0x610] sm:$0xff]
    %v718 = vld [vmem:[#allocation5 + $0x618] sm:$0xff]
    %v719 = vld [vmem:[#allocation5 + $0x620] sm:$0xff]
    %v720 = vld [vmem:[#allocation5 + $0x628] sm:$0xff]
    %v721 = vld [vmem:[#allocation5 + $0x630] sm:$0xff]
    %v722 = vld [vmem:[#allocation5 + $0x638] sm:$0xff]
    %v723 = vld [vmem:[#allocation5 + $0x640] sm:$0xff]
    %v724 = vld [vmem:[#allocation5 + $0x648] sm:$0xff]
    %v725 = vld [vmem:[#allocation5 + $0x650] sm:$0xff]
    %v726 = vld [vmem:[#allocation5 + $0x658] sm:$0xff]
    %v727 = vld [vmem:[#allocation5 + $0x660] sm:$0xff]
    %v728 = vld [vmem:[#allocation5 + $0x668] sm:$0xff]
    %v729 = vld [vmem:[#allocation5 + $0x670] sm:$0xff]
    %v730 = vld [vmem:[#allocation5 + $0x678] sm:$0xff]
    %v731 = vld [vmem:[#allocation5 + $0x680] sm:$0xff]
    %v732 = vld [vmem:[#allocation5 + $0x688] sm:$0xff]
    %v733 = vld [vmem:[#allocation5 + $0x690] sm:$0xff]
    %v734 = vld [vmem:[#allocation5 + $0x698] sm:$0xff]
    %v735 = vld [vmem:[#allocation5 + $0x6a0] sm:$0xff]
    %v736 = vld [vmem:[#allocation5 + $0x6a8] sm:$0xff]
    %v737 = vld [vmem:[#allocation5 + $0x6b0] sm:$0xff]
    %v738 = vld [vmem:[#allocation5 + $0x6b8] sm:$0xff]
    %v739 = vld [vmem:[#allocation5 + $0x6c0] sm:$0xff]
    %v740 = vld [vmem:[#allocation5 + $0x6c8] sm:$0xff]
    %v741 = vld [vmem:[#allocation5 + $0x6d0] sm:$0xff]
    %v742 = vld [vmem:[#allocation5 + $0x6d8] sm:$0xff]
    %v743 = vld [vmem:[#allocation5 + $0x6e0] sm:$0xff]
    %v744 = vld [vmem:[#allocation5 + $0x6e8] sm:$0xff]
    %v745 = vld [vmem:[#allocation5 + $0x6f0] sm:$0xff]
    %v746 = vld [vmem:[#allocation5 + $0x6f8] sm:$0xff]
    %v747 = vld [vmem:[#allocation5 + $0x700] sm:$0xff]
    %v748 = vld [vmem:[#allocation5 + $0x708] sm:$0xff]
    %v749 = vld [vmem:[#allocation5 + $0x710] sm:$0xff]
    %v750 = vld [vmem:[#allocation5 + $0x718] sm:$0xff]
    %v751 = vld [vmem:[#allocation5 + $0x720] sm:$0xff]
    %v752 = vld [vmem:[#allocation5 + $0x728] sm:$0xff]
    %v753 = vld [vmem:[#allocation5 + $0x730] sm:$0xff]
    %v754 = vld [vmem:[#allocation5 + $0x738] sm:$0xff]
    %v755 = vld [vmem:[#allocation5 + $0x740] sm:$0xff]
    %v756 = vld [vmem:[#allocation5 + $0x748] sm:$0xff]
    %v757 = vld [vmem:[#allocation5 + $0x750] sm:$0xff]
    %v758 = vld [vmem:[#allocation5 + $0x758] sm:$0xff]
    %v759 = vld [vmem:[#allocation5 + $0x760] sm:$0xff]
    %v760 = vld [vmem:[#allocation5 + $0x768] sm:$0xff]
    %v761 = vld [vmem:[#allocation5 + $0x770] sm:$0xff]
    %v762 = vld [vmem:[#allocation5 + $0x778] sm:$0xff]
    %v763 = vld [vmem:[#allocation5 + $0x780] sm:$0xff]
    %v764 = vld [vmem:[#allocation5 + $0x788] sm:$0xff]
    %v765 = vld [vmem:[#allocation5 + $0x790] sm:$0xff]
    %v766 = vld [vmem:[#allocation5 + $0x798] sm:$0xff]
    %v767 = vld [vmem:[#allocation5 + $0x7a0] sm:$0xff]
    %v768 = vld [vmem:[#allocation5 + $0x7a8] sm:$0xff]
    %v769 = vld [vmem:[#allocation5 + $0x7b0] sm:$0xff]
    %v770 = vld [vmem:[#allocation5 + $0x7b8] sm:$0xff]
    %v771 = vld [vmem:[#allocation5 + $0x7c0] sm:$0xff]
    %v772 = vld [vmem:[#allocation5 + $0x7c8] sm:$0xff]
    %v773 = vld [vmem:[#allocation5 + $0x7d0] sm:$0xff]
    %v774 = vld [vmem:[#allocation5 + $0x7d8] sm:$0xff]
    %v775 = vld [vmem:[#allocation5 + $0x7e0] sm:$0xff]
    %v776 = vld [vmem:[#allocation5 + $0x7e8] sm:$0xff]
    %v777 = vld [vmem:[#allocation5 + $0x7f0] sm:$0xff]
    %v778 = vld [vmem:[#allocation5 + $0x7f8] sm:$0xff]
    %v779 = vld [vmem:[%s4] sm:$0xf]
    %v781 = vperm.slane %v779, 0
    %v782 = vperm.slane %v779, 1
    %v783 = vperm.slane %v779, 2
    %v784 = vperm.slane %v779, 3
    %789 = vmatpush.msra.mxu0 %v583
    %790 = vmatpush.msra.mxu0 %v579
    %791 = vmatpush.msra.mxu0 %v575
    %792 = vmatpush.msra.mxu0 %v571
    %793 = vmatpush.msra.mxu0 %v567
    %794 = vmatpush.msra.mxu0 %v563
    %795 = vmatpush.msra.mxu0 %v559
    %796 = vmatpush.msra.mxu0 %v555
    %797 = vmatpush.msra.mxu0 %v551
    %798 = vmatpush.msra.mxu0 %v547
    %799 = vmatpush.msra.mxu0 %v543
    %800 = vmatpush.msra.mxu0 %v539
    %801 = vmatpush.msra.mxu0 %v535
    %802 = vmatpush.msra.mxu0 %v531
    %803 = vmatpush.msra.mxu0 %v527
    %804 = vmatpush.msra.mxu0 %v523
    %805 = vmatmul.f32.gmra.mxu0 %v519
    %v806 = vpop.f32.mrf.mxu0
    %v807 = vadd.f32 %v781, %v806
    %808 = vdwg.mxu0
    %809 = vmatpush.msra.mxu0 %v647
    %810 = vmatpush.msra.mxu0 %v643
    %811 = vmatpush.msra.mxu0 %v639
    %812 = vmatpush.msra.mxu0 %v635
    %813 = vmatpush.msra.mxu0 %v631
    %814 = vmatpush.msra.mxu0 %v627
    %815 = vmatpush.msra.mxu0 %v623
    %816 = vmatpush.msra.mxu0 %v619
    %817 = vmatpush.msra.mxu0 %v615
    %818 = vmatpush.msra.mxu0 %v611
    %819 = vmatpush.msra.mxu0 %v607
    %820 = vmatpush.msra.mxu0 %v603
    %821 = vmatpush.msra.mxu0 %v599
    %822 = vmatpush.msra.mxu0 %v595
    %823 = vmatpush.msra.mxu0 %v591
    %824 = vmatpush.msra.mxu0 %v587
    %825 = vmatmul.f32.gmra.mxu0 %v520
    %v826 = vpop.f32.mrf.mxu0
    %v827 = vadd.f32 %v807, %v826
    %828 = vdwg.mxu0
    %829 = vmatpush.msra.mxu0 %v711
    %830 = vmatpush.msra.mxu0 %v707
    %831 = vmatpush.msra.mxu0 %v703
    %832 = vmatpush.msra.mxu0 %v699
    %833 = vmatpush.msra.mxu0 %v695
    %834 = vmatpush.msra.mxu0 %v691
    %835 = vmatpush.msra.mxu0 %v687
    %836 = vmatpush.msra.mxu0 %v683
    %837 = vmatpush.msra.mxu0 %v679
    %838 = vmatpush.msra.mxu0 %v675
    %839 = vmatpush.msra.mxu0 %v671
    %840 = vmatpush.msra.mxu0 %v667
    %841 = vmatpush.msra.mxu0 %v663
    %842 = vmatpush.msra.mxu0 %v659
    %843 = vmatpush.msra.mxu0 %v655
    %844 = vmatpush.msra.mxu0 %v651
    %845 = vmatmul.f32.gmra.mxu0 %v521
    %v846 = vpop.f32.mrf.mxu0
    %v847 = vadd.f32 %v827, %v846
    %848 = vdwg.mxu0
    %849 = vmatpush.msra.mxu0 %v775
    %850 = vmatpush.msra.mxu0 %v771
    %851 = vmatpush.msra.mxu0 %v767
    %852 = vmatpush.msra.mxu0 %v763
    %853 = vmatpush.msra.mxu0 %v759
    %854 = vmatpush.msra.mxu0 %v755
    %855 = vmatpush.msra.mxu0 %v751
    %856 = vmatpush.msra.mxu0 %v747
    %857 = vmatpush.msra.mxu0 %v743
    %858 = vmatpush.msra.mxu0 %v739
    %859 = vmatpush.msra.mxu0 %v735
    %860 = vmatpush.msra.mxu0 %v731
    %861 = vmatpush.msra.mxu0 %v727
    %862 = vmatpush.msra.mxu0 %v723
    %863 = vmatpush.msra.mxu0 %v719
    %864 = vmatpush.msra.mxu0 %v715
    %865 = vmatmul.f32.gmra.mxu0 %v522
    %v866 = vpop.f32.mrf.mxu0
    %v867 = vadd.f32 %v847, %v866
    %868 = vdwg.mxu0
    %869 = vmatpush.msra.mxu0 %v584
    %870 = vmatpush.msra.mxu0 %v580
    %871 = vmatpush.msra.mxu0 %v576
    %872 = vmatpush.msra.mxu0 %v572
    %873 = vmatpush.msra.mxu0 %v568
    %874 = vmatpush.msra.mxu0 %v564
    %875 = vmatpush.msra.mxu0 %v560
    %876 = vmatpush.msra.mxu0 %v556
    %877 = vmatpush.msra.mxu0 %v552
    %878 = vmatpush.msra.mxu0 %v548
    %879 = vmatpush.msra.mxu0 %v544
    %880 = vmatpush.msra.mxu0 %v540
    %881 = vmatpush.msra.mxu0 %v536
    %882 = vmatpush.msra.mxu0 %v532
    %883 = vmatpush.msra.mxu0 %v528
    %884 = vmatpush.msra.mxu0 %v524
    %885 = vmatmul.f32.gmra.mxu0 %v519
    %v886 = vpop.f32.mrf.mxu0
    %v887 = vadd.f32 %v782, %v886
    %888 = vdwg.mxu0
    %889 = vmatpush.msra.mxu0 %v648
    %890 = vmatpush.msra.mxu0 %v644
    %891 = vmatpush.msra.mxu0 %v640
    %892 = vmatpush.msra.mxu0 %v636
    %893 = vmatpush.msra.mxu0 %v632
    %894 = vmatpush.msra.mxu0 %v628
    %895 = vmatpush.msra.mxu0 %v624
    %896 = vmatpush.msra.mxu0 %v620
    %897 = vmatpush.msra.mxu0 %v616
    %898 = vmatpush.msra.mxu0 %v612
    %899 = vmatpush.msra.mxu0 %v608
    %900 = vmatpush.msra.mxu0 %v604
    %901 = vmatpush.msra.mxu0 %v600
    %902 = vmatpush.msra.mxu0 %v596
    %903 = vmatpush.msra.mxu0 %v592
    %904 = vmatpush.msra.mxu0 %v588
    %905 = vmatmul.f32.gmra.mxu0 %v520
    %v906 = vpop.f32.mrf.mxu0
    %v907 = vadd.f32 %v887, %v906
    %908 = vdwg.mxu0
    %909 = vmatpush.msra.mxu0 %v712
    %910 = vmatpush.msra.mxu0 %v708
    %911 = vmatpush.msra.mxu0 %v704
    %912 = vmatpush.msra.mxu0 %v700
    %913 = vmatpush.msra.mxu0 %v696
    %914 = vmatpush.msra.mxu0 %v692
    %915 = vmatpush.msra.mxu0 %v688
    %916 = vmatpush.msra.mxu0 %v684
    %917 = vmatpush.msra.mxu0 %v680
    %918 = vmatpush.msra.mxu0 %v676
    %919 = vmatpush.msra.mxu0 %v672
    %920 = vmatpush.msra.mxu0 %v668
    %921 = vmatpush.msra.mxu0 %v664
    %922 = vmatpush.msra.mxu0 %v660
    %923 = vmatpush.msra.mxu0 %v656
    %924 = vmatpush.msra.mxu0 %v652
    %925 = vmatmul.f32.gmra.mxu0 %v521
    %v926 = vpop.f32.mrf.mxu0
    %v927 = vadd.f32 %v907, %v926
    %928 = vdwg.mxu0
    %929 = vmatpush.msra.mxu0 %v776
    %930 = vmatpush.msra.mxu0 %v772
    %931 = vmatpush.msra.mxu0 %v768
    %932 = vmatpush.msra.mxu0 %v764
    %933 = vmatpush.msra.mxu0 %v760
    %934 = vmatpush.msra.mxu0 %v756
    %935 = vmatpush.msra.mxu0 %v752
    %936 = vmatpush.msra.mxu0 %v748
    %937 = vmatpush.msra.mxu0 %v744
    %938 = vmatpush.msra.mxu0 %v740
    %939 = vmatpush.msra.mxu0 %v736
    %940 = vmatpush.msra.mxu0 %v732
    %941 = vmatpush.msra.mxu0 %v728
    %942 = vmatpush.msra.mxu0 %v724
    %943 = vmatpush.msra.mxu0 %v720
    %944 = vmatpush.msra.mxu0 %v716
    %945 = vmatmul.f32.gmra.mxu0 %v522
    %v946 = vpop.f32.mrf.mxu0
    %v947 = vadd.f32 %v927, %v946
    %948 = vdwg.mxu0
    %949 = vmatpush.msra.mxu0 %v585
    %950 = vmatpush.msra.mxu0 %v581
    %951 = vmatpush.msra.mxu0 %v577
    %952 = vmatpush.msra.mxu0 %v573
    %953 = vmatpush.msra.mxu0 %v569
    %954 = vmatpush.msra.mxu0 %v565
    %955 = vmatpush.msra.mxu0 %v561
    %956 = vmatpush.msra.mxu0 %v557
    %957 = vmatpush.msra.mxu0 %v553
    %958 = vmatpush.msra.mxu0 %v549
    %959 = vmatpush.msra.mxu0 %v545
    %960 = vmatpush.msra.mxu0 %v541
    %961 = vmatpush.msra.mxu0 %v537
    %962 = vmatpush.msra.mxu0 %v533
    %963 = vmatpush.msra.mxu0 %v529
    %964 = vmatpush.msra.mxu0 %v525
    %965 = vmatmul.f32.gmra.mxu0 %v519
    %v966 = vpop.f32.mrf.mxu0
    %v967 = vadd.f32 %v783, %v966
    %968 = vdwg.mxu0
    %969 = vmatpush.msra.mxu0 %v649
    %970 = vmatpush.msra.mxu0 %v645
    %971 = vmatpush.msra.mxu0 %v641
    %972 = vmatpush.msra.mxu0 %v637
    %973 = vmatpush.msra.mxu0 %v633
    %974 = vmatpush.msra.mxu0 %v629
    %975 = vmatpush.msra.mxu0 %v625
    %976 = vmatpush.msra.mxu0 %v621
    %977 = vmatpush.msra.mxu0 %v617
    %978 = vmatpush.msra.mxu0 %v613
    %979 = vmatpush.msra.mxu0 %v609
    %980 = vmatpush.msra.mxu0 %v605
    %981 = vmatpush.msra.mxu0 %v601
    %982 = vmatpush.msra.mxu0 %v597
    %983 = vmatpush.msra.mxu0 %v593
    %984 = vmatpush.msra.mxu0 %v589
    %985 = vmatmul.f32.gmra.mxu0 %v520
    %v986 = vpop.f32.mrf.mxu0
    %v987 = vadd.f32 %v967, %v986
    %988 = vdwg.mxu0
    %989 = vmatpush.msra.mxu0 %v713
    %990 = vmatpush.msra.mxu0 %v709
    %991 = vmatpush.msra.mxu0 %v705
    %992 = vmatpush.msra.mxu0 %v701
    %993 = vmatpush.msra.mxu0 %v697
    %994 = vmatpush.msra.mxu0 %v693
    %995 = vmatpush.msra.mxu0 %v689
    %996 = vmatpush.msra.mxu0 %v685
    %997 = vmatpush.msra.mxu0 %v681
    %998 = vmatpush.msra.mxu0 %v677
    %999 = vmatpush.msra.mxu0 %v673
    %1000 = vmatpush.msra.mxu0 %v669
    %1001 = vmatpush.msra.mxu0 %v665
    %1002 = vmatpush.msra.mxu0 %v661
    %1003 = vmatpush.msra.mxu0 %v657
    %1004 = vmatpush.msra.mxu0 %v653
    %1005 = vmatmul.f32.gmra.mxu0 %v521
    %v1006 = vpop.f32.mrf.mxu0
    %v1007 = vadd.f32 %v987, %v1006
    %1008 = vdwg.mxu0
    %1009 = vmatpush.msra.mxu0 %v777
    %1010 = vmatpush.msra.mxu0 %v773
    %1011 = vmatpush.msra.mxu0 %v769
    %1012 = vmatpush.msra.mxu0 %v765
    %1013 = vmatpush.msra.mxu0 %v761
    %1014 = vmatpush.msra.mxu0 %v757
    %1015 = vmatpush.msra.mxu0 %v753
    %1016 = vmatpush.msra.mxu0 %v749
    %1017 = vmatpush.msra.mxu0 %v745
    %1018 = vmatpush.msra.mxu0 %v741
    %1019 = vmatpush.msra.mxu0 %v737
    %1020 = vmatpush.msra.mxu0 %v733
    %1021 = vmatpush.msra.mxu0 %v729
    %1022 = vmatpush.msra.mxu0 %v725
    %1023 = vmatpush.msra.mxu0 %v721
    %1024 = vmatpush.msra.mxu0 %v717
    %1025 = vmatmul.f32.gmra.mxu0 %v522
    %v1026 = vpop.f32.mrf.mxu0
    %v1027 = vadd.f32 %v1007, %v1026
    %1028 = vdwg.mxu0
    %1029 = vmatpush.msra.mxu0 %v586
    %1030 = vmatpush.msra.mxu0 %v582
    %1031 = vmatpush.msra.mxu0 %v578
    %1032 = vmatpush.msra.mxu0 %v574
    %1033 = vmatpush.msra.mxu0 %v570
    %1034 = vmatpush.msra.mxu0 %v566
    %1035 = vmatpush.msra.mxu0 %v562
    %1036 = vmatpush.msra.mxu0 %v558
    %1037 = vmatpush.msra.mxu0 %v554
    %1038 = vmatpush.msra.mxu0 %v550
    %1039 = vmatpush.msra.mxu0 %v546
    %1040 = vmatpush.msra.mxu0 %v542
    %1041 = vmatpush.msra.mxu0 %v538
    %1042 = vmatpush.msra.mxu0 %v534
    %1043 = vmatpush.msra.mxu0 %v530
    %1044 = vmatpush.msra.mxu0 %v526
    %1045 = vmatmul.f32.gmra.mxu0 %v519
    %v1046 = vpop.f32.mrf.mxu0
    %v1047 = vadd.f32 %v784, %v1046
    %1048 = vdwg.mxu0
    %1049 = vmatpush.msra.mxu0 %v650
    %1050 = vmatpush.msra.mxu0 %v646
    %1051 = vmatpush.msra.mxu0 %v642
    %1052 = vmatpush.msra.mxu0 %v638
    %1053 = vmatpush.msra.mxu0 %v634
    %1054 = vmatpush.msra.mxu0 %v630
    %1055 = vmatpush.msra.mxu0 %v626
    %1056 = vmatpush.msra.mxu0 %v622
    %1057 = vmatpush.msra.mxu0 %v618
    %1058 = vmatpush.msra.mxu0 %v614
    %1059 = vmatpush.msra.mxu0 %v610
    %1060 = vmatpush.msra.mxu0 %v606
    %1061 = vmatpush.msra.mxu0 %v602
    %1062 = vmatpush.msra.mxu0 %v598
    %1063 = vmatpush.msra.mxu0 %v594
    %1064 = vmatpush.msra.mxu0 %v590
    %1065 = vmatmul.f32.gmra.mxu0 %v520
    %v1066 = vpop.f32.mrf.mxu0
    %v1067 = vadd.f32 %v1047, %v1066
    %1068 = vdwg.mxu0
    %1069 = vmatpush.msra.mxu0 %v714
    %1070 = vmatpush.msra.mxu0 %v710
    %1071 = vmatpush.msra.mxu0 %v706
    %1072 = vmatpush.msra.mxu0 %v702
    %1073 = vmatpush.msra.mxu0 %v698
    %1074 = vmatpush.msra.mxu0 %v694
    %1075 = vmatpush.msra.mxu0 %v690
    %1076 = vmatpush.msra.mxu0 %v686
    %1077 = vmatpush.msra.mxu0 %v682
    %1078 = vmatpush.msra.mxu0 %v678
    %1079 = vmatpush.msra.mxu0 %v674
    %1080 = vmatpush.msra.mxu0 %v670
    %1081 = vmatpush.msra.mxu0 %v666
    %1082 = vmatpush.msra.mxu0 %v662
    %1083 = vmatpush.msra.mxu0 %v658
    %1084 = vmatpush.msra.mxu0 %v654
    %1085 = vmatmul.f32.gmra.mxu0 %v521
    %v1086 = vpop.f32.mrf.mxu0
    %v1087 = vadd.f32 %v1067, %v1086
    %1088 = vdwg.mxu0
    %1089 = vmatpush.msra.mxu0 %v778
    %1090 = vmatpush.msra.mxu0 %v774
    %1091 = vmatpush.msra.mxu0 %v770
    %1092 = vmatpush.msra.mxu0 %v766
    %1093 = vmatpush.msra.mxu0 %v762
    %1094 = vmatpush.msra.mxu0 %v758
    %1095 = vmatpush.msra.mxu0 %v754
    %1096 = vmatpush.msra.mxu0 %v750
    %1097 = vmatpush.msra.mxu0 %v746
    %1098 = vmatpush.msra.mxu0 %v742
    %1099 = vmatpush.msra.mxu0 %v738
    %1100 = vmatpush.msra.mxu0 %v734
    %1101 = vmatpush.msra.mxu0 %v730
    %1102 = vmatpush.msra.mxu0 %v726
    %1103 = vmatpush.msra.mxu0 %v722
    %1104 = vmatpush.msra.mxu0 %v718
    %1105 = vmatmul.f32.gmra.mxu0 %v522
    %v1106 = vpop.f32.mrf.mxu0
    %v1107 = vadd.f32 %v1087, %v1106
    %1108 = vdwg.mxu0
    %v1109 = vmax.f32 %v867, 0.0
    %v1110 = vmax.f32 %v947, 0.0
    %v1111 = vmax.f32 %v1027, 0.0
    %v1112 = vmax.f32 %v1107, 0.0
    %v1113 = vld [vmem:[#allocation7] sm:$0xff]
    %v1114 = vld [vmem:[#allocation7 + $0x8] sm:$0xff]
    %v1115 = vld [vmem:[#allocation7 + $0x10] sm:$0xff]
    %v1116 = vld [vmem:[#allocation7 + $0x18] sm:$0xff]
    %v1117 = vld [vmem:[#allocation7 + $0x20] sm:$0xff]
    %v1118 = vld [vmem:[#allocation7 + $0x28] sm:$0xff]
    %v1119 = vld [vmem:[#allocation7 + $0x30] sm:$0xff]
    %v1120 = vld [vmem:[#allocation7 + $0x38] sm:$0xff]
    %v1121 = vld [vmem:[#allocation7 + $0x40] sm:$0xff]
    %v1122 = vld [vmem:[#allocation7 + $0x48] sm:$0xff]
    %v1123 = vld [vmem:[#allocation7 + $0x50] sm:$0xff]
    %v1124 = vld [vmem:[#allocation7 + $0x58] sm:$0xff]
    %v1125 = vld [vmem:[#allocation7 + $0x60] sm:$0xff]
    %v1126 = vld [vmem:[#allocation7 + $0x68] sm:$0xff]
    %v1127 = vld [vmem:[#allocation7 + $0x70] sm:$0xff]
    %v1128 = vld [vmem:[#allocation7 + $0x78] sm:$0xff]
    %v1129 = vld [vmem:[#allocation7 + $0x80] sm:$0xff]
    %v1130 = vld [vmem:[#allocation7 + $0x88] sm:$0xff]
    %v1131 = vld [vmem:[#allocation7 + $0x90] sm:$0xff]
    %v1132 = vld [vmem:[#allocation7 + $0x98] sm:$0xff]
    %v1133 = vld [vmem:[#allocation7 + $0xa0] sm:$0xff]
    %v1134 = vld [vmem:[#allocation7 + $0xa8] sm:$0xff]
    %v1135 = vld [vmem:[#allocation7 + $0xb0] sm:$0xff]
    %v1136 = vld [vmem:[#allocation7 + $0xb8] sm:$0xff]
    %v1137 = vld [vmem:[#allocation7 + $0xc0] sm:$0xff]
    %v1138 = vld [vmem:[#allocation7 + $0xc8] sm:$0xff]
    %v1139 = vld [vmem:[#allocation7 + $0xd0] sm:$0xff]
    %v1140 = vld [vmem:[#allocation7 + $0xd8] sm:$0xff]
    %v1141 = vld [vmem:[#allocation7 + $0xe0] sm:$0xff]
    %v1142 = vld [vmem:[#allocation7 + $0xe8] sm:$0xff]
    %v1143 = vld [vmem:[#allocation7 + $0xf0] sm:$0xff]
    %v1144 = vld [vmem:[#allocation7 + $0xf8] sm:$0xff]
    %v1145 = vld [vmem:[#allocation7 + $0x100] sm:$0xff]
    %v1146 = vld [vmem:[#allocation7 + $0x108] sm:$0xff]
    %v1147 = vld [vmem:[#allocation7 + $0x110] sm:$0xff]
    %v1148 = vld [vmem:[#allocation7 + $0x118] sm:$0xff]
    %v1149 = vld [vmem:[#allocation7 + $0x120] sm:$0xff]
    %v1150 = vld [vmem:[#allocation7 + $0x128] sm:$0xff]
    %v1151 = vld [vmem:[#allocation7 + $0x130] sm:$0xff]
    %v1152 = vld [vmem:[#allocation7 + $0x138] sm:$0xff]
    %v1153 = vld [vmem:[#allocation7 + $0x140] sm:$0xff]
    %v1154 = vld [vmem:[#allocation7 + $0x148] sm:$0xff]
    %v1155 = vld [vmem:[#allocation7 + $0x150] sm:$0xff]
    %v1156 = vld [vmem:[#allocation7 + $0x158] sm:$0xff]
    %v1157 = vld [vmem:[#allocation7 + $0x160] sm:$0xff]
    %v1158 = vld [vmem:[#allocation7 + $0x168] sm:$0xff]
    %v1159 = vld [vmem:[#allocation7 + $0x170] sm:$0xff]
    %v1160 = vld [vmem:[#allocation7 + $0x178] sm:$0xff]
    %v1161 = vld [vmem:[#allocation7 + $0x180] sm:$0xff]
    %v1162 = vld [vmem:[#allocation7 + $0x188] sm:$0xff]
    %v1163 = vld [vmem:[#allocation7 + $0x190] sm:$0xff]
    %v1164 = vld [vmem:[#allocation7 + $0x198] sm:$0xff]
    %v1165 = vld [vmem:[#allocation7 + $0x1a0] sm:$0xff]
    %v1166 = vld [vmem:[#allocation7 + $0x1a8] sm:$0xff]
    %v1167 = vld [vmem:[#allocation7 + $0x1b0] sm:$0xff]
    %v1168 = vld [vmem:[#allocation7 + $0x1b8] sm:$0xff]
    %v1169 = vld [vmem:[#allocation7 + $0x1c0] sm:$0xff]
    %v1170 = vld [vmem:[#allocation7 + $0x1c8] sm:$0xff]
    %v1171 = vld [vmem:[#allocation7 + $0x1d0] sm:$0xff]
    %v1172 = vld [vmem:[#allocation7 + $0x1d8] sm:$0xff]
    %v1173 = vld [vmem:[#allocation7 + $0x1e0] sm:$0xff]
    %v1174 = vld [vmem:[#allocation7 + $0x1e8] sm:$0xff]
    %v1175 = vld [vmem:[#allocation7 + $0x1f0] sm:$0xff]
    %v1176 = vld [vmem:[#allocation7 + $0x1f8] sm:$0xff]
    %v1177 = vld [vmem:[%s6] sm:$0x1]
    %v1179 = vperm.slane %v1177, 0
    %1181 = vmatpush.msra.mxu0 %v1128
    %1182 = vmatpush.msra.mxu0 %v1127
    %1183 = vmatpush.msra.mxu0 %v1126
    %1184 = vmatpush.msra.mxu0 %v1125
    %1185 = vmatpush.msra.mxu0 %v1124
    %1186 = vmatpush.msra.mxu0 %v1123
    %1187 = vmatpush.msra.mxu0 %v1122
    %1188 = vmatpush.msra.mxu0 %v1121
    %1189 = vmatpush.msra.mxu0 %v1120
    %1190 = vmatpush.msra.mxu0 %v1119
    %1191 = vmatpush.msra.mxu0 %v1118
    %1192 = vmatpush.msra.mxu0 %v1117
    %1193 = vmatpush.msra.mxu0 %v1116
    %1194 = vmatpush.msra.mxu0 %v1115
    %1195 = vmatpush.msra.mxu0 %v1114
    %1196 = vmatpush.msra.mxu0 %v1113
    %1197 = vmatmul.f32.gmra.mxu0 %v1109
    %v1198 = vpop.f32.mrf.mxu0
    %v1199 = vadd.f32 %v1179, %v1198
    %1200 = vdwg.mxu0
    %1201 = vmatpush.msra.mxu0 %v1144
    %1202 = vmatpush.msra.mxu0 %v1143
    %1203 = vmatpush.msra.mxu0 %v1142
    %1204 = vmatpush.msra.mxu0 %v1141
    %1205 = vmatpush.msra.mxu0 %v1140
    %1206 = vmatpush.msra.mxu0 %v1139
    %1207 = vmatpush.msra.mxu0 %v1138
    %1208 = vmatpush.msra.mxu0 %v1137
    %1209 = vmatpush.msra.mxu0 %v1136
    %1210 = vmatpush.msra.mxu0 %v1135
    %1211 = vmatpush.msra.mxu0 %v1134
    %1212 = vmatpush.msra.mxu0 %v1133
    %1213 = vmatpush.msra.mxu0 %v1132
    %1214 = vmatpush.msra.mxu0 %v1131
    %1215 = vmatpush.msra.mxu0 %v1130
    %1216 = vmatpush.msra.mxu0 %v1129
    %1217 = vmatmul.f32.gmra.mxu0 %v1110
    %v1218 = vpop.f32.mrf.mxu0
    %v1219 = vadd.f32 %v1199, %v1218
    %1220 = vdwg.mxu0
    %1221 = vmatpush.msra.mxu0 %v1160
    %1222 = vmatpush.msra.mxu0 %v1159
    %1223 = vmatpush.msra.mxu0 %v1158
    %1224 = vmatpush.msra.mxu0 %v1157
    %1225 = vmatpush.msra.mxu0 %v1156
    %1226 = vmatpush.msra.mxu0 %v1155
    %1227 = vmatpush.msra.mxu0 %v1154
    %1228 = vmatpush.msra.mxu0 %v1153
    %1229 = vmatpush.msra.mxu0 %v1152
    %1230 = vmatpush.msra.mxu0 %v1151
    %1231 = vmatpush.msra.mxu0 %v1150
    %1232 = vmatpush.msra.mxu0 %v1149
    %1233 = vmatpush.msra.mxu0 %v1148
    %1234 = vmatpush.msra.mxu0 %v1147
    %1235 = vmatpush.msra.mxu0 %v1146
    %1236 = vmatpush.msra.mxu0 %v1145
    %1237 = vmatmul.f32.gmra.mxu0 %v1111
    %v1238 = vpop.f32.mrf.mxu0
    %v1239 = vadd.f32 %v1219, %v1238
    %1240 = vdwg.mxu0
    %1241 = vmatpush.msra.mxu0 %v1176
    %1242 = vmatpush.msra.mxu0 %v1175
    %1243 = vmatpush.msra.mxu0 %v1174
    %1244 = vmatpush.msra.mxu0 %v1173
    %1245 = vmatpush.msra.mxu0 %v1172
    %1246 = vmatpush.msra.mxu0 %v1171
    %1247 = vmatpush.msra.mxu0 %v1170
    %1248 = vmatpush.msra.mxu0 %v1169
    %1249 = vmatpush.msra.mxu0 %v1168
    %1250 = vmatpush.msra.mxu0 %v1167
    %1251 = vmatpush.msra.mxu0 %v1166
    %1252 = vmatpush.msra.mxu0 %v1165
    %1253 = vmatpush.msra.mxu0 %v1164
    %1254 = vmatpush.msra.mxu0 %v1163
    %1255 = vmatpush.msra.mxu0 %v1162
    %1256 = vmatpush.msra.mxu0 %v1161
    %1257 = vmatmul.f32.gmra.mxu0 %v1112
    %v1258 = vpop.f32.mrf.mxu0
    %v1259 = vadd.f32 %v1239, %v1258
    %1260 = vdwg.mxu0
    %1261 = vst [vmem:[#allocation8] sm:$0xff] %v1259
    // Predicated region
    $region42: #{two_layer_mlp_forward.1} parent=1 // pred_check
      _
    $region43: #{two_layer_mlp_forward.1} parent=1 // pred_check_branch
      %1263 = sbr.rel (0) target = $region45
    $region44: #{two_layer_mlp_forward.1} parent=1 // pred_region
      %1265 = vsyncadd [#allocation4], 0
      %s1267 = sshll.u32 [#allocation8], 4
      %s1268 = int_to_ptr.vmem [resolvable:$true] %s1267
      %s1269 = sshll.u32 %s7, 4
      %s1270 = int_to_ptr.hbm [resolvable:$true] %s1269
      %1272 = dma.vmem_to_hbm [thread:$0]  %s1268, 128, %s1270, [#allocation4]
    $region45: #{two_layer_mlp_forward.1} parent=1 // pred_fallthru
      _
    // Predicated region
    $region46: #{two_layer_mlp_forward.1} parent=1 // pred_check
      _
    $region47: #{two_layer_mlp_forward.1} parent=1 // pred_check_branch
      %1274 = sbr.rel (0) target = $region49
    $region48: #{two_layer_mlp_forward.1} parent=1 // pred_region
      %1276 = dma.done [#allocation4], 128
    $region49: #{two_layer_mlp_forward.1} parent=1 // pred_fallthru
      _
    %1277 = vsyncpa [#allocation3], 1
    %1278 = vsyncpa [#allocation6], 1
    %1279 = vsyncpa [#allocation4], 1

</llo_original>
